<compile_context>
chip_gen: v7x
topology: tpu7x:2x2x1
jax: 0.10.0
libtpu: 0.0.40
codegen_flags: <defaults>
</compile_context>

<pallas_src>
import jax
import jax.numpy as jnp
from jax import lax
from jax.experimental import pallas as pl
from jax.experimental.pallas import tpu as pltpu

_EPS = 1e-5
_NEG_SLOPE = 0.3
_NVEC = 8  # columns of the per-block f32 vector slab


# ---------------------------------------------------------------------------
# kernel body
# ---------------------------------------------------------------------------
def _res_block_body(x, vref, wref, mref, pref, B, meta):
    """One ResBlock on a (cin, B*L) f32 activation -> (cout, B*(L//3)) f32."""
    L, cin, cout, ds = meta["L"], meta["cin"], meta["cout"], meta["downsample"]
    R = B * L
    Lout = L // 3
    NW = B * Lout
    f32, bf16 = jnp.float32, jnp.bfloat16

    # --- per-channel vectors: static column slices of the f32 vector slab ----
    g1 = vref[0:cin, 0:1]
    b1 = vref[0:cin, 1:2]
    cb1 = vref[0:cout, 2:3]
    g2 = vref[0:cout, 3:4]
    b2 = vref[0:cout, 4:5]
    cb2 = vref[0:cout, 5:6]
    bd = vref[0:cout, 6:7]
    bfc = vref[0:cout, 7:8]

    # --- packed bf16 weight slab: static column slices ------------------------
    o = 0
    w1s = wref[:, o:o + 3 * cin]; o += 3 * cin            # (cout, 3*cin)
    w2s = wref[:, o:o + 3 * cout]; o += 3 * cout          # (cout, 3*cout)
    if ds:
        wd = wref[:, o:o + cin]; o += cin                 # (cout, cin)
    wfc = wref[:, o:o + cout]; o += cout                  # (cout, cout)

    # boundary masks (1, R): 0.0 at each sample's first / last column, else 1.0
    not_first = mref[0:1, :]
    not_last = mref[1:2, :]

    inv_r = 1.0 / float(R)

    def bn_lrelu(t, g, beta):
        # training-mode BatchNorm1d (batch stats, biased variance) + LeakyReLU
        mean = jnp.sum(t, axis=1, keepdims=True) * inv_r
        cen = t - mean
        var = jnp.sum(cen * cen, axis=1, keepdims=True) * inv_r
        s = cen * lax.rsqrt(var + _EPS) * g + beta
        return jnp.where(s > 0, s, _NEG_SLOPE * s)

    def conv_k3(t, w_stacked, bias):
        # one bf16 MXU matmul: (cout, 3*c) @ [t_{l-1}; t_l; t_{l+1}]  (3*c, R)
        c = t.shape[0]
        zcol = jnp.zeros((c, 1), f32)
        t_prev = jnp.concatenate([zcol, t[:, :-1]], axis=1) * not_first
        t_next = jnp.concatenate([t[:, 1:], zcol], axis=1) * not_last
        stacked = jnp.concatenate([t_prev, t, t_next], axis=0).astype(bf16)
        return jnp.dot(w_stacked, stacked, preferred_element_type=f32) + bias

    h = bn_lrelu(x, g1, b1)
    h = conv_k3(h, w1s, cb1)
    h = bn_lrelu(h, g2, b2)
    h = conv_k3(h, w2s, cb2)

    if ds:                                       # 1x1 conv on the residual path
        res = jnp.dot(wd, x.astype(bf16), preferred_element_type=f32) + bd
    else:
        res = x
    out = h + res                                # (cout, R)

    # ---- MaxPool1d(kernel=3, stride=3) --------------------------------------
    # pref (R, 3*NW) bf16, pref[r, j*NW + q] = 1 iff r == 3q + j:
    # one bf16 compaction matmul, then a VPU max over the three column groups.
    pm = jnp.dot(out.astype(bf16), pref[...], preferred_element_type=f32)
    pooled = jnp.maximum(jnp.maximum(pm[:, 0:NW], pm[:, NW:2 * NW]),
                         pm[:, 2 * NW:3 * NW])             # (cout, NW)

    # ---- FMS block: avg-pool -> Linear -> sigmoid -> x*y + y ----------------
    inv_lout = 1.0 / float(Lout)
    avg = jnp.concatenate(
        [jnp.sum(pooled[:, b * Lout:(b + 1) * Lout], axis=1, keepdims=True)
         for b in range(B)], axis=1) * inv_lout            # (cout, B)
    z = jnp.dot(wfc, avg.astype(bf16), preferred_element_type=f32) + bfc
    y = 1.0 / (1.0 + jnp.exp(-z))                          # exact sigmoid
    y_cols = jnp.concatenate(
        [jnp.broadcast_to(y[:, b:b + 1], (cout, Lout)) for b in range(B)],
        axis=1)                                            # (cout, NW)
    return pooled * y_cols + y_cols


def _make_kernel(B, metas):
    def kernel(*refs):
        x_ref = refs[0]
        o_ref = refs[-1]
        blk_refs = refs[1:-1]
        h = x_ref[...].astype(jnp.float32)
        for i, meta in enumerate(metas):
            vref, wref, mref, pref = blk_refs[4 * i:4 * i + 4]
            h = _res_block_body(h, vref, wref, mref, pref, B, meta)
        o_ref[...] = h.astype(o_ref.dtype)
    return kernel


# ---------------------------------------------------------------------------
# host-side wrapper
# ---------------------------------------------------------------------------
def _full_spec(shape):
    nd = len(shape)
    return pl.BlockSpec(shape, lambda i, _n=nd: (0,) * _n)


def _block_operands(p, B, L):
    """Pack one block's torch-layout params into 4 kernel operands."""
    f32 = jnp.float32
    cin = int(p["g1"].shape[0])
    cout = int(p["cb1"].shape[0])
    cmax = max(cin, cout)

    def col(v, n):
        c = jnp.zeros((cmax,), f32).at[:n].set(jnp.asarray(v, f32))
        return c[:, None]

    zeros_col = jnp.zeros((cmax, 1), f32)
    vslab = jnp.concatenate(
        [col(p["g1"], cin), col(p["b1"], cin), col(p["cb1"], cout),
         col(p["g2"], cout), col(p["b2"], cout), col(p["cb2"], cout),
         col(p["bd"], cout) if p["downsample"] else zeros_col,
         col(p["bfc"], cout)], axis=1)                       # (cmax, 8) f32
    assert vslab.shape[1] == _NVEC

    def stack_w(w):   # torch (cout, c, 3) -> (cout, 3*c), tap-major columns
        w = jnp.asarray(w, f32)
        return jnp.transpose(w, (0, 2, 1)).reshape(w.shape[0], -1)

    wparts = [stack_w(p["w1"]), stack_w(p["w2"])]
    if p["downsample"]:
        wparts.append(jnp.asarray(p["wd"], f32)[:, :, 0])
    wparts.append(jnp.asarray(p["wfc"], f32))
    wslab = jnp.concatenate(wparts, axis=1).astype(jnp.bfloat16)

    R = B * L
    colr = jnp.arange(R)
    mslab = jnp.stack([(colr % L != 0).astype(f32),
                       (colr % L != L - 1).astype(f32)], axis=0)   # (2, R)

    NW = B * (L // 3)
    r = jnp.arange(R)[:, None]
    cc = jnp.arange(3 * NW)[None, :]
    jj, qq = cc // NW, cc % NW
    psel = (r == 3 * qq + jj).astype(jnp.bfloat16)                 # (R, 3*NW)

    return [vslab, wslab, mslab, psel]


def res_blocks_forward(x_bcl, blocks_params):
    """ResBlocks forward; x_bcl uses the PyTorch (B, C, L) layout."""
    B, c0, l0 = x_bcl.shape
    metas, L, cin = [], l0, c0
    for p in blocks_params:
        cout = int(p["cb1"].shape[0])
        assert int(p["g1"].shape[0]) == cin, "channel chain mismatch"
        # TODO(synk): PyTorch MaxPool1d floor-drops trailing L % 3 positions;
        # only the exactly divisible case is implemented here.
        assert L % 3 == 0, "this kernel requires L % 3 == 0 at every block"
        metas.append(dict(L=L, cin=cin, cout=cout,
                          downsample=bool(p["downsample"])))
        L, cin = L // 3, cout
    lf, cf = L, cin

    # Only boundary layout glue stays outside the kernel (tiny, one-time).
    x_flat = x_bcl.astype(jnp.float32).transpose(1, 0, 2).reshape(c0, B * l0)
    kargs = [x_flat]
    for p, m in zip(blocks_params, metas):
        kargs += _block_operands(p, B, m["L"])

    out_flat = pl.pallas_call(
        _make_kernel(B, metas),
        out_shape=jax.ShapeDtypeStruct((cf, B * lf), jnp.float32),
        grid=(1,),
        in_specs=[_full_spec(a.shape) for a in kargs],
        out_specs=_full_spec((cf, B * lf)),
        compiler_params=pltpu.CompilerParams(
            # grid=(1,): BatchNorm batch statistics couple every sample, so the
            # batch cannot be split across cores without a cross-core reduction
            # (see TODOs at top for the tiled / v7x core-split plan at scale).
            dimension_semantics=("arbitrary",),
        ),
    )(*kargs)
    return out_flat.reshape(cf, B, lf).transpose(1, 0, 2)


# ---------------------------------------------------------------------------
# synthetic parameters + pure-JAX reference (for validation)
# ---------------------------------------------------------------------------
def init_resblock_params(key, cin, cout):
    ks = jax.random.split(key, 12)
    nrm = lambda k, s, sc=0.1: sc * jax.random.normal(k, s, jnp.float32)
    p = {
        "g1": 1.0 + nrm(ks[0], (cin,)), "b1": nrm(ks[1], (cin,)),
        "w1": nrm(ks[2], (cout, cin, 3), 0.3), "cb1": nrm(ks[3], (cout,)),
        "g2": 1.0 + nrm(ks[4], (cout,)), "b2": nrm(ks[5], (cout,)),
        "w2": nrm(ks[6], (cout, cout, 3), 0.3), "cb2": nrm(ks[7], (cout,)),
        "wfc": nrm(ks[10], (cout, cout), 0.3), "bfc": nrm(ks[11], (cout,)),
        "downsample": cin != cout,
    }
    if p["downsample"]:
        p["wd"] = nrm(ks[8], (cout, cin, 1), 0.3)
        p["bd"] = nrm(ks[9], (cout,))
    return p


def _reference_forward(x_bcl, blocks_params):
    """f32 pure-JAX mirror of the PyTorch module (training-mode BN)."""
    def bn(t, g, b):
        m = jnp.mean(t, axis=(0, 2), keepdims=True)
        v = jnp.mean((t - m) ** 2, axis=(0, 2), keepdims=True)
        return (t - m) / jnp.sqrt(v + _EPS) * g.reshape(1, -1, 1) + b.reshape(1, -1, 1)

    def lrelu(t):
        return jnp.where(t > 0, t, _NEG_SLOPE * t)

    def conv3(t, w, bias):
        Lc = t.shape[-1]
        tp = jnp.pad(t, ((0, 0), (0, 0), (1, 1)))
        out = (jnp.einsum("bcl,oc->bol", tp[:, :, 0:Lc], w[:, :, 0])
               + jnp.einsum("bcl,oc->bol", tp[:, :, 1:Lc + 1], w[:, :, 1])
               + jnp.einsum("bcl,oc->bol", tp[:, :, 2:Lc + 2], w[:, :, 2]))
        return out + bias.reshape(1, -1, 1)

    h = x_bcl
    for p in blocks_params:
        res = h
        o = conv3(lrelu(bn(h, p["g1"], p["b1"])), p["w1"], p["cb1"])
        o = conv3(lrelu(bn(o, p["g2"], p["b2"])), p["w2"], p["cb2"])
        if p["downsample"]:
            res = (jnp.einsum("bcl,oc->bol", h, p["wd"][:, :, 0])
                   + p["bd"].reshape(1, -1, 1))
        o = o + res
        Bb, Cc, Lc = o.shape
        lout = Lc // 3
        o = o[:, :, :3 * lout].reshape(Bb, Cc, lout, 3).max(axis=-1)
        y = jax.nn.sigmoid(jnp.mean(o, axis=2) @ p["wfc"].T + p["bfc"])[:, :, None]
        h = o * y + y
    return h


if __name__ == "__main__":
    key = jax.random.PRNGKey(0)
    n_channels = [(4, 8), (8, 8)]                 # ResBlocks([(4, 8), (8, 8)])
    B, L = 2, 18

    kx, kp = jax.random.split(key)
    x = jax.random.normal(kx, (B, n_channels[0][0], L), jnp.float32)
    pkeys = jax.random.split(kp, len(n_channels))
    params = [init_resblock_params(k, ci, co)
              for k, (ci, co) in zip(pkeys, n_channels)]

    out = jax.block_until_ready(res_blocks_forward(x, params))
    assert out.shape == (B, n_channels[-1][1], (L // 3) // 3), out.shape
    assert bool(jnp.all(jnp.isfinite(out)))

    # validate against the f32 reference (bf16 MXU operands introduce small,
    # bounded differences; the sigmoid is exact).
    ref = _reference_forward(x, params)
    max_err = float(jnp.max(jnp.abs(out - ref)))
    assert max_err < 0.15, f"kernel/reference mismatch: max abs err {max_err}"
    print("KERNEL_OK")
</pallas_src>

<mosaic_0001>
module attributes {stable_mosaic.version = 11 : i64} {
  func.func @kernel(%arg0: i32, %arg1: memref<4x36xf32, #tpu.memory_space<vmem>>, %arg2: memref<8x8xf32, #tpu.memory_space<vmem>>, %arg3: memref<8x48xbf16, #tpu.memory_space<vmem>>, %arg4: memref<2x36xf32, #tpu.memory_space<vmem>>, %arg5: memref<36x36xbf16, #tpu.memory_space<vmem>>, %arg6: memref<8x8xf32, #tpu.memory_space<vmem>>, %arg7: memref<8x56xbf16, #tpu.memory_space<vmem>>, %arg8: memref<2x12xf32, #tpu.memory_space<vmem>>, %arg9: memref<12x12xbf16, #tpu.memory_space<vmem>>, %arg10: memref<8x4xf32, #tpu.memory_space<vmem>>) attributes {dimension_semantics = [#tpu.dimension_semantics<arbitrary>], iteration_bounds = array<i64: 1>, scalar_prefetch = 0 : i64, scratch_operands = 0 : i64, tpu.core_type = #tpu.core_type<tc>, window_params = [{pipeline_mode = #tpu.pipeline_mode<synchronous>, transform_indices = @transform_0, window_bounds = array<i64: 4, 36>}, {pipeline_mode = #tpu.pipeline_mode<synchronous>, transform_indices = @transform_1, window_bounds = array<i64: 8, 8>}, {pipeline_mode = #tpu.pipeline_mode<synchronous>, transform_indices = @transform_2, window_bounds = array<i64: 8, 48>}, {pipeline_mode = #tpu.pipeline_mode<synchronous>, transform_indices = @transform_3, window_bounds = array<i64: 2, 36>}, {pipeline_mode = #tpu.pipeline_mode<synchronous>, transform_indices = @transform_4, window_bounds = array<i64: 36, 36>}, {pipeline_mode = #tpu.pipeline_mode<synchronous>, transform_indices = @transform_5, window_bounds = array<i64: 8, 8>}, {pipeline_mode = #tpu.pipeline_mode<synchronous>, transform_indices = @transform_6, window_bounds = array<i64: 8, 56>}, {pipeline_mode = #tpu.pipeline_mode<synchronous>, transform_indices = @transform_7, window_bounds = array<i64: 2, 12>}, {pipeline_mode = #tpu.pipeline_mode<synchronous>, transform_indices = @transform_8, window_bounds = array<i64: 12, 12>}, {pipeline_mode = #tpu.pipeline_mode<synchronous>, transform_indices = @transform_9, window_bounds = array<i64: 8, 4>}]} {
    %c0 = arith.constant 0 : index
    %c0_0 = arith.constant 0 : index
    %0 = vector.load %arg1[%c0, %c0_0] : memref<4x36xf32, #tpu.memory_space<vmem>>, vector<4x36xf32>
    %c0_1 = arith.constant 0 : index
    %c0_2 = arith.constant 0 : index
    %1 = vector.load %arg2[%c0_1, %c0_2] : memref<8x8xf32, #tpu.memory_space<vmem>>, vector<4x1xf32>
    %c0_3 = arith.constant 0 : index
    %c1 = arith.constant 1 : index
    %2 = vector.load %arg2[%c0_3, %c1] : memref<8x8xf32, #tpu.memory_space<vmem>>, vector<4x1xf32>
    %c0_4 = arith.constant 0 : index
    %c2 = arith.constant 2 : index
    %3 = vector.load %arg2[%c0_4, %c2] : memref<8x8xf32, #tpu.memory_space<vmem>>, vector<8x1xf32>
    %c0_5 = arith.constant 0 : index
    %c3 = arith.constant 3 : index
    %4 = vector.load %arg2[%c0_5, %c3] : memref<8x8xf32, #tpu.memory_space<vmem>>, vector<8x1xf32>
    %c0_6 = arith.constant 0 : index
    %c4 = arith.constant 4 : index
    %5 = vector.load %arg2[%c0_6, %c4] : memref<8x8xf32, #tpu.memory_space<vmem>>, vector<8x1xf32>
    %c0_7 = arith.constant 0 : index
    %c5 = arith.constant 5 : index
    %6 = vector.load %arg2[%c0_7, %c5] : memref<8x8xf32, #tpu.memory_space<vmem>>, vector<8x1xf32>
    %c0_8 = arith.constant 0 : index
    %c6 = arith.constant 6 : index
    %7 = vector.load %arg2[%c0_8, %c6] : memref<8x8xf32, #tpu.memory_space<vmem>>, vector<8x1xf32>
    %c0_9 = arith.constant 0 : index
    %c7 = arith.constant 7 : index
    %8 = vector.load %arg2[%c0_9, %c7] : memref<8x8xf32, #tpu.memory_space<vmem>>, vector<8x1xf32>
    %c0_10 = arith.constant 0 : index
    %c0_11 = arith.constant 0 : index
    %9 = vector.load %arg3[%c0_10, %c0_11] : memref<8x48xbf16, #tpu.memory_space<vmem>>, vector<8x12xbf16>
    %c0_12 = arith.constant 0 : index
    %c12 = arith.constant 12 : index
    %10 = vector.load %arg3[%c0_12, %c12] : memref<8x48xbf16, #tpu.memory_space<vmem>>, vector<8x24xbf16>
    %c0_13 = arith.constant 0 : index
    %c36 = arith.constant 36 : index
    %11 = vector.load %arg3[%c0_13, %c36] : memref<8x48xbf16, #tpu.memory_space<vmem>>, vector<8x4xbf16>
    %c0_14 = arith.constant 0 : index
    %c40 = arith.constant 40 : index
    %12 = vector.load %arg3[%c0_14, %c40] : memref<8x48xbf16, #tpu.memory_space<vmem>>, vector<8x8xbf16>
    %c0_15 = arith.constant 0 : index
    %c0_16 = arith.constant 0 : index
    %13 = vector.load %arg4[%c0_15, %c0_16] : memref<2x36xf32, #tpu.memory_space<vmem>>, vector<1x36xf32>
    %c1_17 = arith.constant 1 : index
    %c0_18 = arith.constant 0 : index
    %14 = vector.load %arg4[%c1_17, %c0_18] : memref<2x36xf32, #tpu.memory_space<vmem>>, vector<1x36xf32>
    %cst = arith.constant dense<0.000000e+00> : vector<4xf32>
    %15 = vector.multi_reduction <add>, %0, %cst [1] : vector<4x36xf32> to vector<4xf32>
    %16 = vector.shape_cast %15 : vector<4xf32> to vector<4x1xf32>
    %cst_19 = arith.constant 0.027777778 : f32
    %17 = vector.broadcast %cst_19 : f32 to vector<4x1xf32>
    %18 = arith.mulf %16, %17 : vector<4x1xf32>
    %19 = vector.broadcast %18 : vector<4x1xf32> to vector<4x36xf32>
    %20 = arith.subf %0, %19 : vector<4x36xf32>
    %21 = arith.mulf %20, %20 : vector<4x36xf32>
    %cst_20 = arith.constant dense<0.000000e+00> : vector<4xf32>
    %22 = vector.multi_reduction <add>, %21, %cst_20 [1] : vector<4x36xf32> to vector<4xf32>
    %23 = vector.shape_cast %22 : vector<4xf32> to vector<4x1xf32>
    %cst_21 = arith.constant 0.027777778 : f32
    %24 = vector.broadcast %cst_21 : f32 to vector<4x1xf32>
    %25 = arith.mulf %23, %24 : vector<4x1xf32>
    %cst_22 = arith.constant 9.99999974E-6 : f32
    %26 = vector.broadcast %cst_22 : f32 to vector<4x1xf32>
    %27 = arith.addf %25, %26 : vector<4x1xf32>
    %28 = math.rsqrt %27 : vector<4x1xf32>
    %29 = vector.broadcast %28 : vector<4x1xf32> to vector<4x36xf32>
    %30 = arith.mulf %20, %29 : vector<4x36xf32>
    %31 = vector.broadcast %1 : vector<4x1xf32> to vector<4x36xf32>
    %32 = arith.mulf %30, %31 : vector<4x36xf32>
    %33 = vector.broadcast %2 : vector<4x1xf32> to vector<4x36xf32>
    %34 = arith.addf %32, %33 : vector<4x36xf32>
    %cst_23 = arith.constant 0.000000e+00 : f32
    %35 = vector.broadcast %cst_23 : f32 to vector<4x36xf32>
    %36 = arith.cmpf ogt, %34, %35 : vector<4x36xf32>
    %cst_24 = arith.constant 3.000000e-01 : f32
    %37 = vector.broadcast %cst_24 : f32 to vector<4x36xf32>
    %38 = arith.mulf %37, %34 : vector<4x36xf32>
    %39 = arith.select %36, %34, %38 : vector<4x36xi1>, vector<4x36xf32>
    %cst_25 = arith.constant 0.000000e+00 : f32
    %40 = vector.broadcast %cst_25 : f32 to vector<4x1xf32>
    %41 = vector.extract_strided_slice %39 {offsets = [0, 0], sizes = [4, 35], strides = [1, 1]} : vector<4x36xf32> to vector<4x35xf32>
    %42 = tpu.concatenate %40, %41 in 1 : vector<4x1xf32>, vector<4x35xf32> -> vector<4x36xf32>
    %43 = vector.broadcast %13 : vector<1x36xf32> to vector<4x36xf32>
    %44 = arith.mulf %42, %43 : vector<4x36xf32>
    %45 = vector.extract_strided_slice %39 {offsets = [0, 1], sizes = [4, 35], strides = [1, 1]} : vector<4x36xf32> to vector<4x35xf32>
    %46 = tpu.concatenate %45, %40 in 1 : vector<4x35xf32>, vector<4x1xf32> -> vector<4x36xf32>
    %47 = vector.broadcast %14 : vector<1x36xf32> to vector<4x36xf32>
    %48 = arith.mulf %46, %47 : vector<4x36xf32>
    %49 = tpu.concatenate %44, %39, %48 in 0 : vector<4x36xf32>, vector<4x36xf32>, vector<4x36xf32> -> vector<12x36xf32>
    %50 = arith.truncf %49 : vector<12x36xf32> to vector<12x36xbf16>
    %cst_26 = arith.constant dense<0.000000e+00> : vector<8x36xf32>
    %51 = tpu.matmul %9, %50, %cst_26 {dimension_numbers = #tpu.dot_dimension_numbers<[1], [0], [0], [1], [0, 0, 1, 1], [], []>} : vector<8x12xbf16>, vector<12x36xbf16>, vector<8x36xf32> -> vector<8x36xf32>
    %52 = vector.broadcast %3 : vector<8x1xf32> to vector<8x36xf32>
    %53 = arith.addf %51, %52 : vector<8x36xf32>
    %cst_27 = arith.constant dense<0.000000e+00> : vector<8xf32>
    %54 = vector.multi_reduction <add>, %53, %cst_27 [1] : vector<8x36xf32> to vector<8xf32>
    %55 = vector.shape_cast %54 : vector<8xf32> to vector<8x1xf32>
    %cst_28 = arith.constant 0.027777778 : f32
    %56 = vector.broadcast %cst_28 : f32 to vector<8x1xf32>
    %57 = arith.mulf %55, %56 : vector<8x1xf32>
    %58 = vector.broadcast %57 : vector<8x1xf32> to vector<8x36xf32>
    %59 = arith.subf %53, %58 : vector<8x36xf32>
    %60 = arith.mulf %59, %59 : vector<8x36xf32>
    %cst_29 = arith.constant dense<0.000000e+00> : vector<8xf32>
    %61 = vector.multi_reduction <add>, %60, %cst_29 [1] : vector<8x36xf32> to vector<8xf32>
    %62 = vector.shape_cast %61 : vector<8xf32> to vector<8x1xf32>
    %cst_30 = arith.constant 0.027777778 : f32
    %63 = vector.broadcast %cst_30 : f32 to vector<8x1xf32>
    %64 = arith.mulf %62, %63 : vector<8x1xf32>
    %cst_31 = arith.constant 9.99999974E-6 : f32
    %65 = vector.broadcast %cst_31 : f32 to vector<8x1xf32>
    %66 = arith.addf %64, %65 : vector<8x1xf32>
    %67 = math.rsqrt %66 : vector<8x1xf32>
    %68 = vector.broadcast %67 : vector<8x1xf32> to vector<8x36xf32>
    %69 = arith.mulf %59, %68 : vector<8x36xf32>
    %70 = vector.broadcast %4 : vector<8x1xf32> to vector<8x36xf32>
    %71 = arith.mulf %69, %70 : vector<8x36xf32>
    %72 = vector.broadcast %5 : vector<8x1xf32> to vector<8x36xf32>
    %73 = arith.addf %71, %72 : vector<8x36xf32>
    %cst_32 = arith.constant 0.000000e+00 : f32
    %74 = vector.broadcast %cst_32 : f32 to vector<8x36xf32>
    %75 = arith.cmpf ogt, %73, %74 : vector<8x36xf32>
    %cst_33 = arith.constant 3.000000e-01 : f32
    %76 = vector.broadcast %cst_33 : f32 to vector<8x36xf32>
    %77 = arith.mulf %76, %73 : vector<8x36xf32>
    %78 = arith.select %75, %73, %77 : vector<8x36xi1>, vector<8x36xf32>
    %cst_34 = arith.constant 0.000000e+00 : f32
    %79 = vector.broadcast %cst_34 : f32 to vector<8x1xf32>
    %80 = vector.extract_strided_slice %78 {offsets = [0, 0], sizes = [8, 35], strides = [1, 1]} : vector<8x36xf32> to vector<8x35xf32>
    %81 = tpu.concatenate %79, %80 in 1 : vector<8x1xf32>, vector<8x35xf32> -> vector<8x36xf32>
    %82 = vector.broadcast %13 : vector<1x36xf32> to vector<8x36xf32>
    %83 = arith.mulf %81, %82 : vector<8x36xf32>
    %84 = vector.extract_strided_slice %78 {offsets = [0, 1], sizes = [8, 35], strides = [1, 1]} : vector<8x36xf32> to vector<8x35xf32>
    %85 = tpu.concatenate %84, %79 in 1 : vector<8x35xf32>, vector<8x1xf32> -> vector<8x36xf32>
    %86 = vector.broadcast %14 : vector<1x36xf32> to vector<8x36xf32>
    %87 = arith.mulf %85, %86 : vector<8x36xf32>
    %88 = tpu.concatenate %83, %78, %87 in 0 : vector<8x36xf32>, vector<8x36xf32>, vector<8x36xf32> -> vector<24x36xf32>
    %89 = arith.truncf %88 : vector<24x36xf32> to vector<24x36xbf16>
    %cst_35 = arith.constant dense<0.000000e+00> : vector<8x36xf32>
    %90 = tpu.matmul %10, %89, %cst_35 {dimension_numbers = #tpu.dot_dimension_numbers<[1], [0], [0], [1], [0, 0, 1, 1], [], []>} : vector<8x24xbf16>, vector<24x36xbf16>, vector<8x36xf32> -> vector<8x36xf32>
    %91 = vector.broadcast %6 : vector<8x1xf32> to vector<8x36xf32>
    %92 = arith.addf %90, %91 : vector<8x36xf32>
    %93 = arith.truncf %0 : vector<4x36xf32> to vector<4x36xbf16>
    %cst_36 = arith.constant dense<0.000000e+00> : vector<8x36xf32>
    %94 = tpu.matmul %11, %93, %cst_36 {dimension_numbers = #tpu.dot_dimension_numbers<[1], [0], [0], [1], [0, 0, 1, 1], [], []>} : vector<8x4xbf16>, vector<4x36xbf16>, vector<8x36xf32> -> vector<8x36xf32>
    %95 = vector.broadcast %7 : vector<8x1xf32> to vector<8x36xf32>
    %96 = arith.addf %94, %95 : vector<8x36xf32>
    %97 = arith.addf %92, %96 : vector<8x36xf32>
    %98 = arith.truncf %97 : vector<8x36xf32> to vector<8x36xbf16>
    %c0_37 = arith.constant 0 : index
    %c0_38 = arith.constant 0 : index
    %99 = vector.load %arg5[%c0_37, %c0_38] : memref<36x36xbf16, #tpu.memory_space<vmem>>, vector<36x36xbf16>
    %cst_39 = arith.constant dense<0.000000e+00> : vector<8x36xf32>
    %100 = tpu.matmul %98, %99, %cst_39 {dimension_numbers = #tpu.dot_dimension_numbers<[1], [0], [0], [1], [0, 0, 1, 1], [], []>} : vector<8x36xbf16>, vector<36x36xbf16>, vector<8x36xf32> -> vector<8x36xf32>
    %101 = vector.extract_strided_slice %100 {offsets = [0, 0], sizes = [8, 12], strides = [1, 1]} : vector<8x36xf32> to vector<8x12xf32>
    %102 = vector.extract_strided_slice %100 {offsets = [0, 12], sizes = [8, 12], strides = [1, 1]} : vector<8x36xf32> to vector<8x12xf32>
    %103 = arith.maximumf %101, %102 : vector<8x12xf32>
    %104 = vector.extract_strided_slice %100 {offsets = [0, 24], sizes = [8, 12], strides = [1, 1]} : vector<8x36xf32> to vector<8x12xf32>
    %105 = arith.maximumf %103, %104 : vector<8x12xf32>
    %106 = vector.extract_strided_slice %105 {offsets = [0, 0], sizes = [8, 6], strides = [1, 1]} : vector<8x12xf32> to vector<8x6xf32>
    %cst_40 = arith.constant dense<0.000000e+00> : vector<8xf32>
    %107 = vector.multi_reduction <add>, %106, %cst_40 [1] : vector<8x6xf32> to vector<8xf32>
    %108 = vector.shape_cast %107 : vector<8xf32> to vector<8x1xf32>
    %109 = vector.extract_strided_slice %105 {offsets = [0, 6], sizes = [8, 6], strides = [1, 1]} : vector<8x12xf32> to vector<8x6xf32>
    %cst_41 = arith.constant dense<0.000000e+00> : vector<8xf32>
    %110 = vector.multi_reduction <add>, %109, %cst_41 [1] : vector<8x6xf32> to vector<8xf32>
    %111 = vector.shape_cast %110 : vector<8xf32> to vector<8x1xf32>
    %112 = tpu.concatenate %108, %111 in 1 : vector<8x1xf32>, vector<8x1xf32> -> vector<8x2xf32>
    %cst_42 = arith.constant 0.166666672 : f32
    %113 = vector.broadcast %cst_42 : f32 to vector<8x2xf32>
    %114 = arith.mulf %112, %113 : vector<8x2xf32>
    %115 = arith.truncf %114 : vector<8x2xf32> to vector<8x2xbf16>
    %cst_43 = arith.constant dense<0.000000e+00> : vector<8x2xf32>
    %116 = tpu.matmul %12, %115, %cst_43 {dimension_numbers = #tpu.dot_dimension_numbers<[1], [0], [0], [1], [0, 0, 1, 1], [], []>} : vector<8x8xbf16>, vector<8x2xbf16>, vector<8x2xf32> -> vector<8x2xf32>
    %117 = vector.broadcast %8 : vector<8x1xf32> to vector<8x2xf32>
    %118 = arith.addf %116, %117 : vector<8x2xf32>
    %cst_44 = arith.constant 0.000000e+00 : f32
    %119 = vector.broadcast %cst_44 : f32 to vector<8x2xf32>
    %120 = arith.subf %119, %118 : vector<8x2xf32>
    %121 = math.exp %120 : vector<8x2xf32>
    %cst_45 = arith.constant 1.000000e+00 : f32
    %122 = vector.broadcast %cst_45 : f32 to vector<8x2xf32>
    %123 = arith.addf %122, %121 : vector<8x2xf32>
    %cst_46 = arith.constant 1.000000e+00 : f32
    %124 = vector.broadcast %cst_46 : f32 to vector<8x2xf32>
    %125 = arith.divf %124, %123 : vector<8x2xf32>
    %126 = vector.extract_strided_slice %125 {offsets = [0, 0], sizes = [8, 1], strides = [1, 1]} : vector<8x2xf32> to vector<8x1xf32>
    %127 = vector.shape_cast %126 : vector<8x1xf32> to vector<8x1xf32>
    %128 = vector.broadcast %127 : vector<8x1xf32> to vector<8x6xf32>
    %129 = vector.extract_strided_slice %125 {offsets = [0, 1], sizes = [8, 1], strides = [1, 1]} : vector<8x2xf32> to vector<8x1xf32>
    %130 = vector.shape_cast %129 : vector<8x1xf32> to vector<8x1xf32>
    %131 = vector.broadcast %130 : vector<8x1xf32> to vector<8x6xf32>
    %132 = tpu.concatenate %128, %131 in 1 : vector<8x6xf32>, vector<8x6xf32> -> vector<8x12xf32>
    %133 = arith.mulf %105, %132 : vector<8x12xf32>
    %134 = arith.addf %133, %132 : vector<8x12xf32>
    %c0_47 = arith.constant 0 : index
    %c0_48 = arith.constant 0 : index
    %135 = vector.load %arg6[%c0_47, %c0_48] : memref<8x8xf32, #tpu.memory_space<vmem>>, vector<8x1xf32>
    %c0_49 = arith.constant 0 : index
    %c1_50 = arith.constant 1 : index
    %136 = vector.load %arg6[%c0_49, %c1_50] : memref<8x8xf32, #tpu.memory_space<vmem>>, vector<8x1xf32>
    %c0_51 = arith.constant 0 : index
    %c2_52 = arith.constant 2 : index
    %137 = vector.load %arg6[%c0_51, %c2_52] : memref<8x8xf32, #tpu.memory_space<vmem>>, vector<8x1xf32>
    %c0_53 = arith.constant 0 : index
    %c3_54 = arith.constant 3 : index
    %138 = vector.load %arg6[%c0_53, %c3_54] : memref<8x8xf32, #tpu.memory_space<vmem>>, vector<8x1xf32>
    %c0_55 = arith.constant 0 : index
    %c4_56 = arith.constant 4 : index
    %139 = vector.load %arg6[%c0_55, %c4_56] : memref<8x8xf32, #tpu.memory_space<vmem>>, vector<8x1xf32>
    %c0_57 = arith.constant 0 : index
    %c5_58 = arith.constant 5 : index
    %140 = vector.load %arg6[%c0_57, %c5_58] : memref<8x8xf32, #tpu.memory_space<vmem>>, vector<8x1xf32>
    %c0_59 = arith.constant 0 : index
    %c7_60 = arith.constant 7 : index
    %141 = vector.load %arg6[%c0_59, %c7_60] : memref<8x8xf32, #tpu.memory_space<vmem>>, vector<8x1xf32>
    %c0_61 = arith.constant 0 : index
    %c0_62 = arith.constant 0 : index
    %142 = vector.load %arg7[%c0_61, %c0_62] : memref<8x56xbf16, #tpu.memory_space<vmem>>, vector<8x24xbf16>
    %c0_63 = arith.constant 0 : index
    %c24 = arith.constant 24 : index
    %143 = vector.load %arg7[%c0_63, %c24] : memref<8x56xbf16, #tpu.memory_space<vmem>>, vector<8x24xbf16>
    %c0_64 = arith.constant 0 : index
    %c48 = arith.constant 48 : index
    %144 = vector.load %arg7[%c0_64, %c48] : memref<8x56xbf16, #tpu.memory_space<vmem>>, vector<8x8xbf16>
    %c0_65 = arith.constant 0 : index
    %c0_66 = arith.constant 0 : index
    %145 = vector.load %arg8[%c0_65, %c0_66] : memref<2x12xf32, #tpu.memory_space<vmem>>, vector<1x12xf32>
    %c1_67 = arith.constant 1 : index
    %c0_68 = arith.constant 0 : index
    %146 = vector.load %arg8[%c1_67, %c0_68] : memref<2x12xf32, #tpu.memory_space<vmem>>, vector<1x12xf32>
    %cst_69 = arith.constant dense<0.000000e+00> : vector<8xf32>
    %147 = vector.multi_reduction <add>, %134, %cst_69 [1] : vector<8x12xf32> to vector<8xf32>
    %148 = vector.shape_cast %147 : vector<8xf32> to vector<8x1xf32>
    %cst_70 = arith.constant 0.0833333358 : f32
    %149 = vector.broadcast %cst_70 : f32 to vector<8x1xf32>
    %150 = arith.mulf %148, %149 : vector<8x1xf32>
    %151 = vector.broadcast %150 : vector<8x1xf32> to vector<8x12xf32>
    %152 = arith.subf %134, %151 : vector<8x12xf32>
    %153 = arith.mulf %152, %152 : vector<8x12xf32>
    %cst_71 = arith.constant dense<0.000000e+00> : vector<8xf32>
    %154 = vector.multi_reduction <add>, %153, %cst_71 [1] : vector<8x12xf32> to vector<8xf32>
    %155 = vector.shape_cast %154 : vector<8xf32> to vector<8x1xf32>
    %cst_72 = arith.constant 0.0833333358 : f32
    %156 = vector.broadcast %cst_72 : f32 to vector<8x1xf32>
    %157 = arith.mulf %155, %156 : vector<8x1xf32>
    %cst_73 = arith.constant 9.99999974E-6 : f32
    %158 = vector.broadcast %cst_73 : f32 to vector<8x1xf32>
    %159 = arith.addf %157, %158 : vector<8x1xf32>
    %160 = math.rsqrt %159 : vector<8x1xf32>
    %161 = vector.broadcast %160 : vector<8x1xf32> to vector<8x12xf32>
    %162 = arith.mulf %152, %161 : vector<8x12xf32>
    %163 = vector.broadcast %135 : vector<8x1xf32> to vector<8x12xf32>
    %164 = arith.mulf %162, %163 : vector<8x12xf32>
    %165 = vector.broadcast %136 : vector<8x1xf32> to vector<8x12xf32>
    %166 = arith.addf %164, %165 : vector<8x12xf32>
    %cst_74 = arith.constant 0.000000e+00 : f32
    %167 = vector.broadcast %cst_74 : f32 to vector<8x12xf32>
    %168 = arith.cmpf ogt, %166, %167 : vector<8x12xf32>
    %cst_75 = arith.constant 3.000000e-01 : f32
    %169 = vector.broadcast %cst_75 : f32 to vector<8x12xf32>
    %170 = arith.mulf %169, %166 : vector<8x12xf32>
    %171 = arith.select %168, %166, %170 : vector<8x12xi1>, vector<8x12xf32>
    %cst_76 = arith.constant 0.000000e+00 : f32
    %172 = vector.broadcast %cst_76 : f32 to vector<8x1xf32>
    %173 = vector.extract_strided_slice %171 {offsets = [0, 0], sizes = [8, 11], strides = [1, 1]} : vector<8x12xf32> to vector<8x11xf32>
    %174 = tpu.concatenate %172, %173 in 1 : vector<8x1xf32>, vector<8x11xf32> -> vector<8x12xf32>
    %175 = vector.broadcast %145 : vector<1x12xf32> to vector<8x12xf32>
    %176 = arith.mulf %174, %175 : vector<8x12xf32>
    %177 = vector.extract_strided_slice %171 {offsets = [0, 1], sizes = [8, 11], strides = [1, 1]} : vector<8x12xf32> to vector<8x11xf32>
    %178 = tpu.concatenate %177, %172 in 1 : vector<8x11xf32>, vector<8x1xf32> -> vector<8x12xf32>
    %179 = vector.broadcast %146 : vector<1x12xf32> to vector<8x12xf32>
    %180 = arith.mulf %178, %179 : vector<8x12xf32>
    %181 = tpu.concatenate %176, %171, %180 in 0 : vector<8x12xf32>, vector<8x12xf32>, vector<8x12xf32> -> vector<24x12xf32>
    %182 = arith.truncf %181 : vector<24x12xf32> to vector<24x12xbf16>
    %cst_77 = arith.constant dense<0.000000e+00> : vector<8x12xf32>
    %183 = tpu.matmul %142, %182, %cst_77 {dimension_numbers = #tpu.dot_dimension_numbers<[1], [0], [0], [1], [0, 0, 1, 1], [], []>} : vector<8x24xbf16>, vector<24x12xbf16>, vector<8x12xf32> -> vector<8x12xf32>
    %184 = vector.broadcast %137 : vector<8x1xf32> to vector<8x12xf32>
    %185 = arith.addf %183, %184 : vector<8x12xf32>
    %cst_78 = arith.constant dense<0.000000e+00> : vector<8xf32>
    %186 = vector.multi_reduction <add>, %185, %cst_78 [1] : vector<8x12xf32> to vector<8xf32>
    %187 = vector.shape_cast %186 : vector<8xf32> to vector<8x1xf32>
    %cst_79 = arith.constant 0.0833333358 : f32
    %188 = vector.broadcast %cst_79 : f32 to vector<8x1xf32>
    %189 = arith.mulf %187, %188 : vector<8x1xf32>
    %190 = vector.broadcast %189 : vector<8x1xf32> to vector<8x12xf32>
    %191 = arith.subf %185, %190 : vector<8x12xf32>
    %192 = arith.mulf %191, %191 : vector<8x12xf32>
    %cst_80 = arith.constant dense<0.000000e+00> : vector<8xf32>
    %193 = vector.multi_reduction <add>, %192, %cst_80 [1] : vector<8x12xf32> to vector<8xf32>
    %194 = vector.shape_cast %193 : vector<8xf32> to vector<8x1xf32>
    %cst_81 = arith.constant 0.0833333358 : f32
    %195 = vector.broadcast %cst_81 : f32 to vector<8x1xf32>
    %196 = arith.mulf %194, %195 : vector<8x1xf32>
    %cst_82 = arith.constant 9.99999974E-6 : f32
    %197 = vector.broadcast %cst_82 : f32 to vector<8x1xf32>
    %198 = arith.addf %196, %197 : vector<8x1xf32>
    %199 = math.rsqrt %198 : vector<8x1xf32>
    %200 = vector.broadcast %199 : vector<8x1xf32> to vector<8x12xf32>
    %201 = arith.mulf %191, %200 : vector<8x12xf32>
    %202 = vector.broadcast %138 : vector<8x1xf32> to vector<8x12xf32>
    %203 = arith.mulf %201, %202 : vector<8x12xf32>
    %204 = vector.broadcast %139 : vector<8x1xf32> to vector<8x12xf32>
    %205 = arith.addf %203, %204 : vector<8x12xf32>
    %cst_83 = arith.constant 0.000000e+00 : f32
    %206 = vector.broadcast %cst_83 : f32 to vector<8x12xf32>
    %207 = arith.cmpf ogt, %205, %206 : vector<8x12xf32>
    %cst_84 = arith.constant 3.000000e-01 : f32
    %208 = vector.broadcast %cst_84 : f32 to vector<8x12xf32>
    %209 = arith.mulf %208, %205 : vector<8x12xf32>
    %210 = arith.select %207, %205, %209 : vector<8x12xi1>, vector<8x12xf32>
    %cst_85 = arith.constant 0.000000e+00 : f32
    %211 = vector.broadcast %cst_85 : f32 to vector<8x1xf32>
    %212 = vector.extract_strided_slice %210 {offsets = [0, 0], sizes = [8, 11], strides = [1, 1]} : vector<8x12xf32> to vector<8x11xf32>
    %213 = tpu.concatenate %211, %212 in 1 : vector<8x1xf32>, vector<8x11xf32> -> vector<8x12xf32>
    %214 = vector.broadcast %145 : vector<1x12xf32> to vector<8x12xf32>
    %215 = arith.mulf %213, %214 : vector<8x12xf32>
    %216 = vector.extract_strided_slice %210 {offsets = [0, 1], sizes = [8, 11], strides = [1, 1]} : vector<8x12xf32> to vector<8x11xf32>
    %217 = tpu.concatenate %216, %211 in 1 : vector<8x11xf32>, vector<8x1xf32> -> vector<8x12xf32>
    %218 = vector.broadcast %146 : vector<1x12xf32> to vector<8x12xf32>
    %219 = arith.mulf %217, %218 : vector<8x12xf32>
    %220 = tpu.concatenate %215, %210, %219 in 0 : vector<8x12xf32>, vector<8x12xf32>, vector<8x12xf32> -> vector<24x12xf32>
    %221 = arith.truncf %220 : vector<24x12xf32> to vector<24x12xbf16>
    %cst_86 = arith.constant dense<0.000000e+00> : vector<8x12xf32>
    %222 = tpu.matmul %143, %221, %cst_86 {dimension_numbers = #tpu.dot_dimension_numbers<[1], [0], [0], [1], [0, 0, 1, 1], [], []>} : vector<8x24xbf16>, vector<24x12xbf16>, vector<8x12xf32> -> vector<8x12xf32>
    %223 = vector.broadcast %140 : vector<8x1xf32> to vector<8x12xf32>
    %224 = arith.addf %222, %223 : vector<8x12xf32>
    %225 = arith.addf %224, %134 : vector<8x12xf32>
    %226 = arith.truncf %225 : vector<8x12xf32> to vector<8x12xbf16>
    %c0_87 = arith.constant 0 : index
    %c0_88 = arith.constant 0 : index
    %227 = vector.load %arg9[%c0_87, %c0_88] : memref<12x12xbf16, #tpu.memory_space<vmem>>, vector<12x12xbf16>
    %cst_89 = arith.constant dense<0.000000e+00> : vector<8x12xf32>
    %228 = tpu.matmul %226, %227, %cst_89 {dimension_numbers = #tpu.dot_dimension_numbers<[1], [0], [0], [1], [0, 0, 1, 1], [], []>} : vector<8x12xbf16>, vector<12x12xbf16>, vector<8x12xf32> -> vector<8x12xf32>
    %229 = vector.extract_strided_slice %228 {offsets = [0, 0], sizes = [8, 4], strides = [1, 1]} : vector<8x12xf32> to vector<8x4xf32>
    %230 = vector.extract_strided_slice %228 {offsets = [0, 4], sizes = [8, 4], strides = [1, 1]} : vector<8x12xf32> to vector<8x4xf32>
    %231 = arith.maximumf %229, %230 : vector<8x4xf32>
    %232 = vector.extract_strided_slice %228 {offsets = [0, 8], sizes = [8, 4], strides = [1, 1]} : vector<8x12xf32> to vector<8x4xf32>
    %233 = arith.maximumf %231, %232 : vector<8x4xf32>
    %234 = vector.extract_strided_slice %233 {offsets = [0, 0], sizes = [8, 2], strides = [1, 1]} : vector<8x4xf32> to vector<8x2xf32>
    %cst_90 = arith.constant dense<0.000000e+00> : vector<8xf32>
    %235 = vector.multi_reduction <add>, %234, %cst_90 [1] : vector<8x2xf32> to vector<8xf32>
    %236 = vector.shape_cast %235 : vector<8xf32> to vector<8x1xf32>
    %237 = vector.extract_strided_slice %233 {offsets = [0, 2], sizes = [8, 2], strides = [1, 1]} : vector<8x4xf32> to vector<8x2xf32>
    %cst_91 = arith.constant dense<0.000000e+00> : vector<8xf32>
    %238 = vector.multi_reduction <add>, %237, %cst_91 [1] : vector<8x2xf32> to vector<8xf32>
    %239 = vector.shape_cast %238 : vector<8xf32> to vector<8x1xf32>
    %240 = tpu.concatenate %236, %239 in 1 : vector<8x1xf32>, vector<8x1xf32> -> vector<8x2xf32>
    %cst_92 = arith.constant 5.000000e-01 : f32
    %241 = vector.broadcast %cst_92 : f32 to vector<8x2xf32>
    %242 = arith.mulf %240, %241 : vector<8x2xf32>
    %243 = arith.truncf %242 : vector<8x2xf32> to vector<8x2xbf16>
    %cst_93 = arith.constant dense<0.000000e+00> : vector<8x2xf32>
    %244 = tpu.matmul %144, %243, %cst_93 {dimension_numbers = #tpu.dot_dimension_numbers<[1], [0], [0], [1], [0, 0, 1, 1], [], []>} : vector<8x8xbf16>, vector<8x2xbf16>, vector<8x2xf32> -> vector<8x2xf32>
    %245 = vector.broadcast %141 : vector<8x1xf32> to vector<8x2xf32>
    %246 = arith.addf %244, %245 : vector<8x2xf32>
    %cst_94 = arith.constant 0.000000e+00 : f32
    %247 = vector.broadcast %cst_94 : f32 to vector<8x2xf32>
    %248 = arith.subf %247, %246 : vector<8x2xf32>
    %249 = math.exp %248 : vector<8x2xf32>
    %cst_95 = arith.constant 1.000000e+00 : f32
    %250 = vector.broadcast %cst_95 : f32 to vector<8x2xf32>
    %251 = arith.addf %250, %249 : vector<8x2xf32>
    %cst_96 = arith.constant 1.000000e+00 : f32
    %252 = vector.broadcast %cst_96 : f32 to vector<8x2xf32>
    %253 = arith.divf %252, %251 : vector<8x2xf32>
    %254 = vector.extract_strided_slice %253 {offsets = [0, 0], sizes = [8, 1], strides = [1, 1]} : vector<8x2xf32> to vector<8x1xf32>
    %255 = vector.shape_cast %254 : vector<8x1xf32> to vector<8x1xf32>
    %256 = vector.broadcast %255 : vector<8x1xf32> to vector<8x2xf32>
    %257 = vector.extract_strided_slice %253 {offsets = [0, 1], sizes = [8, 1], strides = [1, 1]} : vector<8x2xf32> to vector<8x1xf32>
    %258 = vector.shape_cast %257 : vector<8x1xf32> to vector<8x1xf32>
    %259 = vector.broadcast %258 : vector<8x1xf32> to vector<8x2xf32>
    %260 = tpu.concatenate %256, %259 in 1 : vector<8x2xf32>, vector<8x2xf32> -> vector<8x4xf32>
    %261 = arith.mulf %233, %260 : vector<8x4xf32>
    %262 = arith.addf %261, %260 : vector<8x4xf32>
    %c0_97 = arith.constant 0 : index
    %c0_98 = arith.constant 0 : index
    %263 = vector.load %arg10[%c0_97, %c0_98] : memref<8x4xf32, #tpu.memory_space<vmem>>, vector<8x4xf32>
    tpu.vector_store %arg10[%c0_97, %c0_98], %262 {strides = array<i32>} : memref<8x4xf32, #tpu.memory_space<vmem>>, vector<8x4xf32>,
    return
  }
  func.func @transform_0(%arg0: i32) -> (i32, i32) {
    %c0_i32 = arith.constant 0 : i32
    %c0_i32_0 = arith.constant 0 : i32
    %c0_i32_1 = arith.constant 0 : i32
    return %c0_i32, %c0_i32_0 : i32, i32
  }
  func.func @transform_1(%arg0: i32) -> (i32, i32) {
    %c0_i32 = arith.constant 0 : i32
    %c0_i32_0 = arith.constant 0 : i32
    %c0_i32_1 = arith.constant 0 : i32
    return %c0_i32, %c0_i32_0 : i32, i32
  }
  func.func @transform_2(%arg0: i32) -> (i32, i32) {
    %c0_i32 = arith.constant 0 : i32
    %c0_i32_0 = arith.constant 0 : i32
    %c0_i32_1 = arith.constant 0 : i32
    return %c0_i32, %c0_i32_0 : i32, i32
  }
  func.func @transform_3(%arg0: i32) -> (i32, i32) {
    %c0_i32 = arith.constant 0 : i32
    %c0_i32_0 = arith.constant 0 : i32
    %c0_i32_1 = arith.constant 0 : i32
    return %c0_i32, %c0_i32_0 : i32, i32
  }
  func.func @transform_4(%arg0: i32) -> (i32, i32) {
    %c0_i32 = arith.constant 0 : i32
    %c0_i32_0 = arith.constant 0 : i32
    %c0_i32_1 = arith.constant 0 : i32
    return %c0_i32, %c0_i32_0 : i32, i32
  }
  func.func @transform_5(%arg0: i32) -> (i32, i32) {
    %c0_i32 = arith.constant 0 : i32
    %c0_i32_0 = arith.constant 0 : i32
    %c0_i32_1 = arith.constant 0 : i32
    return %c0_i32, %c0_i32_0 : i32, i32
  }
  func.func @transform_6(%arg0: i32) -> (i32, i32) {
    %c0_i32 = arith.constant 0 : i32
    %c0_i32_0 = arith.constant 0 : i32
    %c0_i32_1 = arith.constant 0 : i32
    return %c0_i32, %c0_i32_0 : i32, i32
  }
  func.func @transform_7(%arg0: i32) -> (i32, i32) {
    %c0_i32 = arith.constant 0 : i32
    %c0_i32_0 = arith.constant 0 : i32
    %c0_i32_1 = arith.constant 0 : i32
    return %c0_i32, %c0_i32_0 : i32, i32
  }
  func.func @transform_8(%arg0: i32) -> (i32, i32) {
    %c0_i32 = arith.constant 0 : i32
    %c0_i32_0 = arith.constant 0 : i32
    %c0_i32_1 = arith.constant 0 : i32
    return %c0_i32, %c0_i32_0 : i32, i32
  }
  func.func @transform_9(%arg0: i32) -> (i32, i32) {
    %c0_i32 = arith.constant 0 : i32
    %c0_i32_0 = arith.constant 0 : i32
    %c0_i32_1 = arith.constant 0 : i32
    return %c0_i32, %c0_i32_0 : i32, i32
  }
}

</mosaic_0001>

<llo_original>
// kernel: tpu_custom_call.1
$region0: #{tpu_custom_call.1}
  #allocation0 [shape = 'u32[]', space=smem, size = 0x4, offset = 0x4, fixed_abs, tag = 'smem constant byte address 0x4 - core index']
  #allocation1 [shape = 'u32[144,128]{1,0:T(1,128)}', space=vmem, size = 0x12000, scoped, tag = 'internal scratch']
  %s0 = inlined_call_operand.hbm [shape: f32[4,36], index: 0, kind: input, shape index: {}]
  %s1 = inlined_call_operand.hbm [shape: f32[8,8], index: 1, kind: input, shape index: {}]
  %s2 = inlined_call_operand.hbm [shape: bf16[8,48], index: 2, kind: input, shape index: {}]
  %s3 = inlined_call_operand.vmem [shape: f32[2,36], index: 3, kind: input, shape index: {}]
  %s4 = inlined_call_operand.hbm [shape: bf16[36,36], index: 4, kind: input, shape index: {}]
  %s5 = inlined_call_operand.vmem [shape: f32[8,8], index: 5, kind: input, shape index: {}]
  %s6 = inlined_call_operand.vmem [shape: bf16[8,56], index: 6, kind: input, shape index: {}]
  %s7 = inlined_call_operand.vmem [shape: f32[2,12], index: 7, kind: input, shape index: {}]
  %s8 = inlined_call_operand.vmem [shape: bf16[12,12], index: 8, kind: input, shape index: {}]
  %s9 = inlined_call_operand.vmem [shape: f32[8,4], index: 9, kind: output, shape index: {}]
  %s10 = sld [smem:[#allocation0]]
  $region62: #{tpu_custom_call.1} parent=0
    _
  %s12 = ssub.s32 1, %s10
  %s13 = scalar_select 0, %s12, %s10
  $region1: #{tpu_custom_call.1} parent=0
    #allocation2 [shape = 'u8[2048]{0}', space=vmem, size = 0x800, scoped, tag = 'input window, operand 0, single buffered']
    #allocation3 [shape = 's32[1]{0}', space=sflag, size = 0x4, scoped, tag = 'scoped memory for tpu_custom_call.1']
    #allocation4 [shape = 'u8[4096]{0}', space=vmem, size = 0x1000, scoped, tag = 'input window, operand 1, single buffered']
    #allocation5 [shape = 's32[1]{0}', space=sflag, size = 0x4, scoped, tag = 'scoped memory for tpu_custom_call.1']
    #allocation6 [shape = 'u8[2048]{0}', space=vmem, size = 0x800, scoped, tag = 'input window, operand 2, single buffered']
    #allocation7 [shape = 'u8[10240]{0}', space=vmem, size = 0x2800, scoped, tag = 'input window, operand 4, single buffered']
    #allocation8 [shape = 's32[1]{0}', space=sflag, size = 0x4, scoped, tag = 'scoped memory for tpu_custom_call.1']
    %14 = vsyncpa [#allocation3], 0
    %15 = vsyncpa [#allocation5], 0
    %16 = vsyncpa [#allocation8], 0
    // Predicated region
    $region2: #{tpu_custom_call.1} parent=1 // pred_check
      _
    $region3: #{tpu_custom_call.1} parent=1 // pred_check_branch
      %18 = sbr.rel (0) target = $region5
    $region4: #{tpu_custom_call.1} parent=1 // pred_region
      %s20 = ssub.s32 64, 64
      %21 = vsyncadd [#allocation3], %s20
      %s23 = sshll.u32 [#allocation2], 4
      %s24 = int_to_ptr.vmem [resolvable:$true] %s23
      %26 = dma.hbm_to_vmem [thread:$0]  %s0, 64, %s24, [#allocation3]
    $region5: #{tpu_custom_call.1} parent=1 // pred_fallthru
      _
    // Predicated region
    $region6: #{tpu_custom_call.1} parent=1 // pred_check
      _
    $region7: #{tpu_custom_call.1} parent=1 // pred_check_branch
      %28 = sbr.rel (0) target = $region9
    $region8: #{tpu_custom_call.1} parent=1 // pred_region
      %s30 = ssub.s32 128, 128
      %31 = vsyncadd [#allocation5], %s30
      %s33 = sshll.u32 [#allocation4], 4
      %s34 = int_to_ptr.vmem [resolvable:$true] %s33
      %36 = dma.hbm_to_vmem [thread:$0]  %s1, 128, %s34, [#allocation5]
    $region9: #{tpu_custom_call.1} parent=1 // pred_fallthru
      _
    // Predicated region
    $region10: #{tpu_custom_call.1} parent=1 // pred_check
      _
    $region11: #{tpu_custom_call.1} parent=1 // pred_check_branch
      %38 = sbr.rel (0) target = $region13
    $region12: #{tpu_custom_call.1} parent=1 // pred_region
      %s40 = ssub.s32 64, 64
      %41 = vsyncadd [#allocation5], %s40
      %s43 = sshll.u32 [#allocation6], 4
      %s44 = int_to_ptr.vmem [resolvable:$true] %s43
      %46 = dma.hbm_to_vmem [thread:$0]  %s2, 64, %s44, [#allocation5]
    $region13: #{tpu_custom_call.1} parent=1 // pred_fallthru
      _
    // Predicated region
    $region14: #{tpu_custom_call.1} parent=1 // pred_check
      _
    $region15: #{tpu_custom_call.1} parent=1 // pred_check_branch
      %48 = sbr.rel (0) target = $region17
    $region16: #{tpu_custom_call.1} parent=1 // pred_region
      _
    $region17: #{tpu_custom_call.1} parent=1 // pred_fallthru
      _
    // Predicated region
    $region18: #{tpu_custom_call.1} parent=1 // pred_check
      _
    $region19: #{tpu_custom_call.1} parent=1 // pred_check_branch
      %50 = sbr.rel (0) target = $region21
    $region20: #{tpu_custom_call.1} parent=1 // pred_region
      %s52 = ssub.s32 320, 320
      %53 = vsyncadd [#allocation8], %s52
      %s54 = sshll.u32 [#allocation7], 4
      %s55 = int_to_ptr.vmem [resolvable:$true] %s54
      %60 = dma.hbm_to_vmem [thread:$0]  %s4, 320, %s55, [#allocation8], 64, 64, 4
    $region21: #{tpu_custom_call.1} parent=1 // pred_fallthru
      _
    // Predicated region
    $region22: #{tpu_custom_call.1} parent=1 // pred_check
      _
    $region23: #{tpu_custom_call.1} parent=1 // pred_check_branch
      %62 = sbr.rel (0) target = $region25
    $region24: #{tpu_custom_call.1} parent=1 // pred_region
      _
    $region25: #{tpu_custom_call.1} parent=1 // pred_fallthru
      _
    // Predicated region
    $region26: #{tpu_custom_call.1} parent=1 // pred_check
      _
    $region27: #{tpu_custom_call.1} parent=1 // pred_check_branch
      %64 = sbr.rel (0) target = $region29
    $region28: #{tpu_custom_call.1} parent=1 // pred_region
      _
    $region29: #{tpu_custom_call.1} parent=1 // pred_fallthru
      _
    // Predicated region
    $region30: #{tpu_custom_call.1} parent=1 // pred_check
      _
    $region31: #{tpu_custom_call.1} parent=1 // pred_check_branch
      %66 = sbr.rel (0) target = $region33
    $region32: #{tpu_custom_call.1} parent=1 // pred_region
      _
    $region33: #{tpu_custom_call.1} parent=1 // pred_fallthru
      _
    // Predicated region
    $region34: #{tpu_custom_call.1} parent=1 // pred_check
      _
    $region35: #{tpu_custom_call.1} parent=1 // pred_check_branch
      %68 = sbr.rel (0) target = $region37
    $region36: #{tpu_custom_call.1} parent=1 // pred_region
      _
    $region37: #{tpu_custom_call.1} parent=1 // pred_fallthru
      _
    // Predicated region
    $region38: #{tpu_custom_call.1} parent=1 // pred_check
      _
    $region39: #{tpu_custom_call.1} parent=1 // pred_check_branch
      %70 = sbr.rel (0) target = $region41
    $region40: #{tpu_custom_call.1} parent=1 // pred_region
      %71 = dma.done [#allocation3], 64
    $region41: #{tpu_custom_call.1} parent=1 // pred_fallthru
      _
    // Predicated region
    $region42: #{tpu_custom_call.1} parent=1 // pred_check
      _
    $region43: #{tpu_custom_call.1} parent=1 // pred_check_branch
      %73 = sbr.rel (0) target = $region45
    $region44: #{tpu_custom_call.1} parent=1 // pred_region
      %74 = dma.done [#allocation5], 128
    $region45: #{tpu_custom_call.1} parent=1 // pred_fallthru
      _
    // Predicated region
    $region46: #{tpu_custom_call.1} parent=1 // pred_check
      _
    $region47: #{tpu_custom_call.1} parent=1 // pred_check_branch
      %76 = sbr.rel (0) target = $region49
    $region48: #{tpu_custom_call.1} parent=1 // pred_region
      %77 = dma.done [#allocation5], 64
    $region49: #{tpu_custom_call.1} parent=1 // pred_fallthru
      _
    // Predicated region
    $region50: #{tpu_custom_call.1} parent=1 // pred_check
      _
    $region51: #{tpu_custom_call.1} parent=1 // pred_check_branch
      %79 = sbr.rel (0) target = $region53
    $region52: #{tpu_custom_call.1} parent=1 // pred_region
      %80 = dma.done [#allocation8], 320
    $region53: #{tpu_custom_call.1} parent=1 // pred_fallthru
      _
    %v82 = vld [vmem:[#allocation2] sm:$0xf]
    %v83 = vld [vmem:[#allocation4] sm:$0xf]
    %v84 = vld [vmem:[#allocation4] sm:$0xff]
    %v85 = vld [vmem:[#allocation6] sm:$0xf]
    %v86 = vld [vmem:[%s3] sm:$0x1]
    %v87 = vld [vmem:[%s3 + $0x1] sm:$0x1]
    %vm88 = vcmask 289792
    %v89 = vsel %vm88, %v82, 0.0
    %90 = vadd.xlane.f32.xlu0 %v89
    %v91 = vpop.xlane.xlu0 %90
    %v92 = vmul.f32 %v91, 0.027777778
    %v93 = vsub.f32 %v82, %v92
    %v94 = vmul.f32 %v93, %v93
    %v95 = vsel %vm88, %v94, 0.0
    %96 = vadd.xlane.f32.xlu0 %v95
    %v97 = vpop.xlane.xlu0 %96
    %v98 = vmul.f32 %v97, 0.027777778
    %v99 = vadd.f32 %v98, 1e-05
    %v100 = vrsqrt.pop %v99
    %v101 = vmul.f32 %v93, %v100
    %103 = vset.pattern.permute.xlu0 0
    %104 = vperm.xlu0 %103, %v83
    %v105 = vpop.permute.xlu0 %104
    %v107 = vmul.f32 %v101, %v105
    %108 = vset.pattern.permute.xlu0 1
    %109 = vperm.xlu0 %108, %v83
    %v110 = vpop.permute.xlu0 %109
    %v112 = vadd.f32 %v107, %v110
    %vm113 = vcmp.gt.f32.partialorder %v112, 0.0
    %v114 = vmul.f32 %v112, 0.3
    %v115 = vsel %vm113, %v112, %v114
    %117 = vrot.lane.b32.xlu0 %v115, 1
    %v118 = vpop.permute.xlu0 %117
    %vm120 = vcmask 7168
    %v121 = vsel %vm120, 0.0, %v118
    %v122 = vlaneseq
    %v123 = vshrl.u32 %v122, 7
    %v124 = vsub.s32 0, %v123
    %v125 = vrot.slane %v86, %v124
    %v126 = vmul.f32 %v121, %v125
    %127 = vrot.lane.b32.xlu0 %v115, 127
    %v128 = vpop.permute.xlu0 %127
    %vm130 = vcmask 285696
    %v131 = vsel %vm130, %v128, 0.0
    %v132 = vlaneseq
    %v133 = vshrl.u32 %v132, 7
    %v134 = vsub.s32 0, %v133
    %v135 = vrot.slane %v87, %v134
    %v136 = vmul.f32 %v131, %v135
    %v137 = vrot.slane %v115, 4
    %vm139 = vcmask 1043456
    %v140 = vsel %vm139, %v126, %v137
    %v141 = vpack.c.bf16 %v136, %v140
    %143 = vset.pattern.permute.xlu0 2
    %144 = vperm.xlu0 %143, %v84
    %v145 = vpop.permute.xlu0 %144
    %vm147 = vcmask 97280
    %v149 = vsel %vm147, %v85, 0
    %vm151 = vcmask 1045504
    %v153 = vsel %vm151, %v141, 0
    %155 = vmatprep.subr.bf16.mxu0 0
    %156 = vmatpush1.bf16.msra.mxu0 %v153
    %157 = vmatprep.subr.bf16.mxu0 0
    %158 = vmatpush1.bf16.msra.mxu0 0
    %159 = vmatprep.subr.bf16.mxu0 0
    %160 = vmatpush1.bf16.msra.mxu0 0
    %161 = vmatprep.subr.bf16.mxu0 0
    %162 = vmatpush1.bf16.msra.mxu0 0
    %163 = vmatprep.subr.bf16.mxu0 0
    %164 = vmatpush1.bf16.msra.mxu0 0
    %165 = vmatprep.subr.bf16.mxu0 0
    %166 = vmatpush1.bf16.msra.mxu0 0
    %167 = vmatprep.subr.bf16.mxu0 0
    %168 = vmatpush1.bf16.msra.mxu0 0
    %169 = vmatprep.subr.bf16.mxu0 0
    %170 = vmatpush1.bf16.msra.mxu0 0
    %171 = vmatprep.subr.bf16.mxu0 0
    %172 = vmatpush1.bf16.msra.mxu0 0
    %173 = vmatprep.subr.bf16.mxu0 0
    %174 = vmatpush1.bf16.msra.mxu0 0
    %175 = vmatprep.subr.bf16.mxu0 0
    %176 = vmatpush1.bf16.msra.mxu0 0
    %177 = vmatprep.subr.bf16.mxu0 0
    %178 = vmatpush1.bf16.msra.mxu0 0
    %179 = vmatprep.subr.bf16.mxu0 0
    %180 = vmatpush1.bf16.msra.mxu0 0
    %181 = vmatprep.subr.bf16.mxu0 0
    %182 = vmatpush1.bf16.msra.mxu0 0
    %183 = vmatprep.subr.bf16.mxu0 0
    %184 = vmatpush1.bf16.msra.mxu0 0
    %185 = vmatprep.subr.bf16.mxu0 0
    %186 = vmatpush1.bf16.msra.mxu0 0
    %187 = vmatprep.mubr.bf16.mxu0 0
    %188 = vmatmul.mubr.bf16.gmra.mrb[0].mxu0 %v149
    %v189 = vpop.f32.mrb[0].mxu0
    %v190 = vadd.f32 %v145, %v189
    %v191 = vpop.f32.mrb[0].mxu0
    %v192 = vpop.f32.mrb[0].mxu0
    %v193 = vpop.f32.mrb[0].mxu0
    %194 = vdwg.mxu0
    %vm195 = vcmask 293888
    %v196 = vsel %vm195, %v190, 0.0
    %197 = vadd.xlane.f32.xlu0 %v196
    %v198 = vpop.xlane.xlu0 %197
    %v199 = vmul.f32 %v198, 0.027777778
    %v200 = vsub.f32 %v190, %v199
    %v201 = vmul.f32 %v200, %v200
    %v202 = vsel %vm195, %v201, 0.0
    %203 = vadd.xlane.f32.xlu0 %v202
    %v204 = vpop.xlane.xlu0 %203
    %v205 = vmul.f32 %v204, 0.027777778
    %v206 = vadd.f32 %v205, 1e-05
    %v207 = vrsqrt.pop %v206
    %v208 = vmul.f32 %v200, %v207
    %209 = vset.pattern.permute.xlu0 3
    %210 = vperm.xlu0 %209, %v84
    %v211 = vpop.permute.xlu0 %210
    %v213 = vmul.f32 %v208, %v211
    %214 = vset.pattern.permute.xlu0 4
    %215 = vperm.xlu0 %214, %v84
    %v216 = vpop.permute.xlu0 %215
    %v218 = vadd.f32 %v213, %v216
    %vm219 = vcmp.gt.f32.partialorder %v218, 0.0
    %v220 = vmul.f32 %v218, 0.3
    %v221 = vsel %vm219, %v218, %v220
    %223 = vrot.lane.b32.xlu0 %v221, 1
    %v224 = vpop.permute.xlu0 %223
    %v226 = vsel %vm120, 0.0, %v224
    %v227 = vmul.f32 %v226, %v125
    %228 = vrot.lane.b32.xlu0 %v221, 127
    %v229 = vpop.permute.xlu0 %228
    %v231 = vsel %vm130, %v229, 0.0
    %v232 = vmul.f32 %v231, %v135
    %v233 = vpack.c.bf16 %v221, %v227
    %v234 = vpack.c.bf16 %v232, %v232
    %235 = vset.pattern.permute.xlu0 5
    %236 = vperm.xlu0 %235, %v84
    %v237 = vpop.permute.xlu0 %236
    %v240 = vunpack.c.l.b16 %v85
    %v241 = vpack.c.b16 %v240, %v240
    %242 = vrot.lane.b32.xlu0 %v241, 116
    %v243 = vpop.permute.xlu0 %242
    %vm244 = vcmask 195584
    %v246 = vsel %vm244, %v243, 0
    %v249 = vsel %vm139, %v234, 0
    %251 = vmatprep.subr.bf16.mxu0 0
    %252 = vmatpush1.bf16.msra.mxu0 %v233
    %253 = vmatprep.subr.bf16.mxu0 0
    %254 = vmatpush1.bf16.msra.mxu0 %v249
    %255 = vmatprep.subr.bf16.mxu0 0
    %256 = vmatpush1.bf16.msra.mxu0 0
    %257 = vmatprep.subr.bf16.mxu0 0
    %258 = vmatpush1.bf16.msra.mxu0 0
    %259 = vmatprep.subr.bf16.mxu0 0
    %260 = vmatpush1.bf16.msra.mxu0 0
    %261 = vmatprep.subr.bf16.mxu0 0
    %262 = vmatpush1.bf16.msra.mxu0 0
    %263 = vmatprep.subr.bf16.mxu0 0
    %264 = vmatpush1.bf16.msra.mxu0 0
    %265 = vmatprep.subr.bf16.mxu0 0
    %266 = vmatpush1.bf16.msra.mxu0 0
    %267 = vmatprep.subr.bf16.mxu0 0
    %268 = vmatpush1.bf16.msra.mxu0 0
    %269 = vmatprep.subr.bf16.mxu0 0
    %270 = vmatpush1.bf16.msra.mxu0 0
    %271 = vmatprep.subr.bf16.mxu0 0
    %272 = vmatpush1.bf16.msra.mxu0 0
    %273 = vmatprep.subr.bf16.mxu0 0
    %274 = vmatpush1.bf16.msra.mxu0 0
    %275 = vmatprep.subr.bf16.mxu0 0
    %276 = vmatpush1.bf16.msra.mxu0 0
    %277 = vmatprep.subr.bf16.mxu0 0
    %278 = vmatpush1.bf16.msra.mxu0 0
    %279 = vmatprep.subr.bf16.mxu0 0
    %280 = vmatpush1.bf16.msra.mxu0 0
    %281 = vmatprep.subr.bf16.mxu0 0
    %282 = vmatpush1.bf16.msra.mxu0 0
    %283 = vmatprep.mubr.bf16.mxu0 0
    %284 = vmatmul.mubr.bf16.gmra.mrb[0].mxu0 %v246
    %v285 = vpop.f32.mrb[0].mxu0
    %v286 = vadd.f32 %v237, %v285
    %v287 = vpop.f32.mrb[0].mxu0
    %v288 = vpop.f32.mrb[0].mxu0
    %v289 = vpop.f32.mrb[0].mxu0
    %290 = vdwg.mxu0
    %v291 = vpack.c.bf16 %v82, %v82
    %292 = vset.pattern.permute.xlu0 6
    %293 = vperm.xlu0 %292, %v84
    %v294 = vpop.permute.xlu0 %293
    %296 = vrot.lane.b32.xlu0 %v241, 92
    %v297 = vpop.permute.xlu0 %296
    %vm298 = vcmask 31744
    %v300 = vsel %vm298, %v297, 0
    %vm302 = vcmask 1041408
    %v304 = vsel %vm302, %v291, 0
    %306 = vmatprep.subr.bf16.mxu0 0
    %307 = vmatpush1.bf16.msra.mxu0 %v304
    %308 = vmatprep.subr.bf16.mxu0 0
    %309 = vmatpush1.bf16.msra.mxu0 0
    %310 = vmatprep.subr.bf16.mxu0 0
    %311 = vmatpush1.bf16.msra.mxu0 0
    %312 = vmatprep.subr.bf16.mxu0 0
    %313 = vmatpush1.bf16.msra.mxu0 0
    %314 = vmatprep.subr.bf16.mxu0 0
    %315 = vmatpush1.bf16.msra.mxu0 0
    %316 = vmatprep.subr.bf16.mxu0 0
    %317 = vmatpush1.bf16.msra.mxu0 0
    %318 = vmatprep.subr.bf16.mxu0 0
    %319 = vmatpush1.bf16.msra.mxu0 0
    %320 = vmatprep.subr.bf16.mxu0 0
    %321 = vmatpush1.bf16.msra.mxu0 0
    %322 = vmatprep.subr.bf16.mxu0 0
    %323 = vmatpush1.bf16.msra.mxu0 0
    %324 = vmatprep.subr.bf16.mxu0 0
    %325 = vmatpush1.bf16.msra.mxu0 0
    %326 = vmatprep.subr.bf16.mxu0 0
    %327 = vmatpush1.bf16.msra.mxu0 0
    %328 = vmatprep.subr.bf16.mxu0 0
    %329 = vmatpush1.bf16.msra.mxu0 0
    %330 = vmatprep.subr.bf16.mxu0 0
    %331 = vmatpush1.bf16.msra.mxu0 0
    %332 = vmatprep.subr.bf16.mxu0 0
    %333 = vmatpush1.bf16.msra.mxu0 0
    %334 = vmatprep.subr.bf16.mxu0 0
    %335 = vmatpush1.bf16.msra.mxu0 0
    %336 = vmatprep.subr.bf16.mxu0 0
    %337 = vmatpush1.bf16.msra.mxu0 0
    %338 = vmatprep.mubr.bf16.mxu0 0
    %339 = vmatmul.mubr.bf16.gmra.mrb[0].mxu0 %v300
    %v340 = vpop.f32.mrb[0].mxu0
    %v341 = vadd.f32 %v294, %v340
    %v342 = vpop.f32.mrb[0].mxu0
    %v343 = vpop.f32.mrb[0].mxu0
    %v344 = vpop.f32.mrb[0].mxu0
    %345 = vdwg.mxu0
    %v346 = vadd.f32 %v286, %v341
    %v347 = vpack.c.bf16 %v346, %v346
    %v348 = vld [vmem:[#allocation7] sm:$0xf]
    %v349 = vld [vmem:[#allocation7 + $0x4] sm:$0xf]
    %v350 = vld [vmem:[#allocation7 + $0x8] sm:$0xf]
    %v351 = vld [vmem:[#allocation7 + $0xc] sm:$0xf]
    %v352 = vld [vmem:[#allocation7 + $0x10] sm:$0x3]
    %v358 = vunpack.c.l.b16 %v348
    %v359 = vunpack.c.l.b16 %v349
    %v360 = vunpack.c.l.b16 %v350
    %v361 = vunpack.c.l.b16 %v351
    %v362 = vunpack.c.l.b16 %v352
    %v363 = vpack.c.b16 %v359, %v358
    %v364 = vpack.c.b16 %v361, %v360
    %v365 = vpack.c.b16 %v362, %v362
    %v369 = vsel %vm195, %v347, 0
    %v372 = vsel %vm302, %v365, 0
    %374 = vmatprep.subr.bf16.mxu0 0
    %375 = vmatpush1.bf16.msra.mxu0 %v363
    %376 = vmatprep.subr.bf16.mxu0 0
    %377 = vmatpush1.bf16.msra.mxu0 %v364
    %378 = vmatprep.subr.bf16.mxu0 0
    %379 = vmatpush1.bf16.msra.mxu0 %v372
    %380 = vmatprep.subr.bf16.mxu0 0
    %381 = vmatpush1.bf16.msra.mxu0 0
    %382 = vmatprep.subr.bf16.mxu0 0
    %383 = vmatpush1.bf16.msra.mxu0 0
    %384 = vmatprep.subr.bf16.mxu0 0
    %385 = vmatpush1.bf16.msra.mxu0 0
    %386 = vmatprep.subr.bf16.mxu0 0
    %387 = vmatpush1.bf16.msra.mxu0 0
    %388 = vmatprep.subr.bf16.mxu0 0
    %389 = vmatpush1.bf16.msra.mxu0 0
    %390 = vmatprep.subr.bf16.mxu0 0
    %391 = vmatpush1.bf16.msra.mxu0 0
    %392 = vmatprep.subr.bf16.mxu0 0
    %393 = vmatpush1.bf16.msra.mxu0 0
    %394 = vmatprep.subr.bf16.mxu0 0
    %395 = vmatpush1.bf16.msra.mxu0 0
    %396 = vmatprep.subr.bf16.mxu0 0
    %397 = vmatpush1.bf16.msra.mxu0 0
    %398 = vmatprep.subr.bf16.mxu0 0
    %399 = vmatpush1.bf16.msra.mxu0 0
    %400 = vmatprep.subr.bf16.mxu0 0
    %401 = vmatpush1.bf16.msra.mxu0 0
    %402 = vmatprep.subr.bf16.mxu0 0
    %403 = vmatpush1.bf16.msra.mxu0 0
    %404 = vmatprep.subr.bf16.mxu0 0
    %405 = vmatpush1.bf16.msra.mxu0 0
    %406 = vmatprep.mubr.bf16.mxu0 0
    %407 = vmatmul.mubr.bf16.gmra.mrb[0].mxu0 %v369
    %v408 = vpop.f32.mrb[0].mxu0
    %v409 = vadd.f32 0.0, %v408
    %v410 = vpop.f32.mrb[0].mxu0
    %v411 = vpop.f32.mrb[0].mxu0
    %v412 = vpop.f32.mrb[0].mxu0
    %413 = vdwg.mxu0
    %415 = vrot.lane.b32.xlu0 %v409, 116
    %v416 = vpop.permute.xlu0 %415
    %v418 = vmax.f32 %v409, %v416
    %419 = vrot.lane.b32.xlu0 %v409, 104
    %v420 = vpop.permute.xlu0 %419
    %v422 = vmax.f32 %v418, %v420
    %vm423 = vcmask 48128
    %v424 = vsel %vm423, %v422, 0.0
    %425 = vadd.xlane.f32.xlu0 %v424
    %v426 = vpop.xlane.xlu0 %425
    %428 = vrot.lane.b32.xlu0 %v422, 122
    %v429 = vpop.permute.xlu0 %428
    %v431 = vsel %vm423, %v429, 0.0
    %432 = vadd.xlane.f32.xlu0 %v431
    %v433 = vpop.xlane.xlu0 %432
    %v434 = vsel %vm120, %v426, %v433
    %v435 = vmul.f32 %v434, 0.16666667
    %v436 = vpack.c.bf16 %v435, %v435
    %437 = vset.pattern.permute.xlu0 7
    %438 = vperm.xlu0 %437, %v84
    %v439 = vpop.permute.xlu0 %438
    %441 = vrot.lane.b32.xlu0 %v241, 88
    %v442 = vpop.permute.xlu0 %441
    %vm443 = vcmask 64512
    %v445 = vsel %vm443, %v442, 0
    %v448 = vsel %vm139, %v436, 0
    %450 = vmatprep.subr.bf16.mxu0 0
    %451 = vmatpush1.bf16.msra.mxu0 %v448
    %452 = vmatprep.subr.bf16.mxu0 0
    %453 = vmatpush1.bf16.msra.mxu0 0
    %454 = vmatprep.subr.bf16.mxu0 0
    %455 = vmatpush1.bf16.msra.mxu0 0
    %456 = vmatprep.subr.bf16.mxu0 0
    %457 = vmatpush1.bf16.msra.mxu0 0
    %458 = vmatprep.subr.bf16.mxu0 0
    %459 = vmatpush1.bf16.msra.mxu0 0
    %460 = vmatprep.subr.bf16.mxu0 0
    %461 = vmatpush1.bf16.msra.mxu0 0
    %462 = vmatprep.subr.bf16.mxu0 0
    %463 = vmatpush1.bf16.msra.mxu0 0
    %464 = vmatprep.subr.bf16.mxu0 0
    %465 = vmatpush1.bf16.msra.mxu0 0
    %466 = vmatprep.subr.bf16.mxu0 0
    %467 = vmatpush1.bf16.msra.mxu0 0
    %468 = vmatprep.subr.bf16.mxu0 0
    %469 = vmatpush1.bf16.msra.mxu0 0
    %470 = vmatprep.subr.bf16.mxu0 0
    %471 = vmatpush1.bf16.msra.mxu0 0
    %472 = vmatprep.subr.bf16.mxu0 0
    %473 = vmatpush1.bf16.msra.mxu0 0
    %474 = vmatprep.subr.bf16.mxu0 0
    %475 = vmatpush1.bf16.msra.mxu0 0
    %476 = vmatprep.subr.bf16.mxu0 0
    %477 = vmatpush1.bf16.msra.mxu0 0
    %478 = vmatprep.subr.bf16.mxu0 0
    %479 = vmatpush1.bf16.msra.mxu0 0
    %480 = vmatprep.subr.bf16.mxu0 0
    %481 = vmatpush1.bf16.msra.mxu0 0
    %482 = vmatprep.mubr.bf16.mxu0 0
    %483 = vmatmul.mubr.bf16.gmra.mrb[0].mxu0 %v445
    %v484 = vpop.f32.mrb[0].mxu0
    %v485 = vadd.f32 %v439, %v484
    %v486 = vpop.f32.mrb[0].mxu0
    %v487 = vpop.f32.mrb[0].mxu0
    %v488 = vpop.f32.mrb[0].mxu0
    %489 = vdwg.mxu0
    %v490 = vsub.f32 0.0, %v485
    %v491 = vmul.f32 %v490, 1.442695
    %v492 = vpow.pop %v491
    %v493 = vadd.f32 %v492, 1.0
    %v494 = vrcp.pop %v493
    %v495 = vmul.f32 1.0, %v494
    %497 = vset.pattern.permute.xlu0 0
    %498 = vperm.xlu0 %497, %v495
    %v499 = vpop.permute.xlu0 %498
    %501 = vset.pattern.permute.xlu0 1
    %502 = vperm.xlu0 %501, %v495
    %v503 = vpop.permute.xlu0 %502
    %v505 = vsel %vm423, %v499, %v503
    %v506 = vmul.f32 %v422, %v505
    %v507 = vadd.f32 %v506, %v505
    %v508 = vld [vmem:[%s5] sm:$0xff]
    %v509 = vld [vmem:[%s6] sm:$0xf]
    %v510 = vld [vmem:[%s7] sm:$0x1]
    %v511 = vld [vmem:[%s7 + $0x1] sm:$0x1]
    %v512 = vsel %vm147, %v507, 0.0
    %513 = vadd.xlane.f32.xlu0 %v512
    %v514 = vpop.xlane.xlu0 %513
    %v515 = vmul.f32 %v514, 0.083333336
    %v516 = vsub.f32 %v507, %v515
    %v517 = vmul.f32 %v516, %v516
    %v518 = vsel %vm147, %v517, 0.0
    %519 = vadd.xlane.f32.xlu0 %v518
    %v520 = vpop.xlane.xlu0 %519
    %v521 = vmul.f32 %v520, 0.083333336
    %v522 = vadd.f32 %v521, 1e-05
    %v523 = vrsqrt.pop %v522
    %v524 = vmul.f32 %v516, %v523
    %526 = vset.pattern.permute.xlu0 0
    %527 = vperm.xlu0 %526, %v508
    %v528 = vpop.permute.xlu0 %527
    %v530 = vmul.f32 %v524, %v528
    %531 = vset.pattern.permute.xlu0 1
    %532 = vperm.xlu0 %531, %v508
    %v533 = vpop.permute.xlu0 %532
    %v535 = vadd.f32 %v530, %v533
    %vm536 = vcmp.gt.f32.partialorder %v535, 0.0
    %v537 = vmul.f32 %v535, 0.3
    %v538 = vsel %vm536, %v535, %v537
    %540 = vrot.lane.b32.xlu0 %v538, 1
    %v541 = vpop.permute.xlu0 %540
    %v543 = vsel %vm120, 0.0, %v541
    %v544 = vlaneseq
    %v545 = vshrl.u32 %v544, 7
    %v546 = vsub.s32 0, %v545
    %v547 = vrot.slane %v510, %v546
    %v548 = vmul.f32 %v543, %v547
    %549 = vrot.lane.b32.xlu0 %v538, 127
    %v550 = vpop.permute.xlu0 %549
    %vm552 = vcmask 89088
    %v553 = vsel %vm552, %v550, 0.0
    %v554 = vlaneseq
    %v555 = vshrl.u32 %v554, 7
    %v556 = vsub.s32 0, %v555
    %v557 = vrot.slane %v511, %v556
    %v558 = vmul.f32 %v553, %v557
    %v559 = vpack.c.bf16 %v538, %v548
    %v560 = vpack.c.bf16 %v558, %v558
    %561 = vset.pattern.permute.xlu0 2
    %562 = vperm.xlu0 %561, %v508
    %v563 = vpop.permute.xlu0 %562
    %v566 = vsel %vm244, %v509, 0
    %v569 = vsel %vm139, %v560, 0
    %571 = vmatprep.subr.bf16.mxu0 0
    %572 = vmatpush1.bf16.msra.mxu0 %v559
    %573 = vmatprep.subr.bf16.mxu0 0
    %574 = vmatpush1.bf16.msra.mxu0 %v569
    %575 = vmatprep.subr.bf16.mxu0 0
    %576 = vmatpush1.bf16.msra.mxu0 0
    %577 = vmatprep.subr.bf16.mxu0 0
    %578 = vmatpush1.bf16.msra.mxu0 0
    %579 = vmatprep.subr.bf16.mxu0 0
    %580 = vmatpush1.bf16.msra.mxu0 0
    %581 = vmatprep.subr.bf16.mxu0 0
    %582 = vmatpush1.bf16.msra.mxu0 0
    %583 = vmatprep.subr.bf16.mxu0 0
    %584 = vmatpush1.bf16.msra.mxu0 0
    %585 = vmatprep.subr.bf16.mxu0 0
    %586 = vmatpush1.bf16.msra.mxu0 0
    %587 = vmatprep.subr.bf16.mxu0 0
    %588 = vmatpush1.bf16.msra.mxu0 0
    %589 = vmatprep.subr.bf16.mxu0 0
    %590 = vmatpush1.bf16.msra.mxu0 0
    %591 = vmatprep.subr.bf16.mxu0 0
    %592 = vmatpush1.bf16.msra.mxu0 0
    %593 = vmatprep.subr.bf16.mxu0 0
    %594 = vmatpush1.bf16.msra.mxu0 0
    %595 = vmatprep.subr.bf16.mxu0 0
    %596 = vmatpush1.bf16.msra.mxu0 0
    %597 = vmatprep.subr.bf16.mxu0 0
    %598 = vmatpush1.bf16.msra.mxu0 0
    %599 = vmatprep.subr.bf16.mxu0 0
    %600 = vmatpush1.bf16.msra.mxu0 0
    %601 = vmatprep.subr.bf16.mxu0 0
    %602 = vmatpush1.bf16.msra.mxu0 0
    %603 = vmatprep.mubr.bf16.mxu0 0
    %604 = vmatmul.mubr.bf16.gmra.mrb[0].mxu0 %v566
    %v605 = vpop.f32.mrb[0].mxu0
    %v606 = vadd.f32 %v563, %v605
    %v607 = vpop.f32.mrb[0].mxu0
    %v608 = vpop.f32.mrb[0].mxu0
    %v609 = vpop.f32.mrb[0].mxu0
    %610 = vdwg.mxu0
    %v611 = vsel %vm147, %v606, 0.0
    %612 = vadd.xlane.f32.xlu0 %v611
    %v613 = vpop.xlane.xlu0 %612
    %v614 = vmul.f32 %v613, 0.083333336
    %v615 = vsub.f32 %v606, %v614
    %v616 = vmul.f32 %v615, %v615
    %v617 = vsel %vm147, %v616, 0.0
    %618 = vadd.xlane.f32.xlu0 %v617
    %v619 = vpop.xlane.xlu0 %618
    %v620 = vmul.f32 %v619, 0.083333336
    %v621 = vadd.f32 %v620, 1e-05
    %v622 = vrsqrt.pop %v621
    %v623 = vmul.f32 %v615, %v622
    %624 = vset.pattern.permute.xlu0 3
    %625 = vperm.xlu0 %624, %v508
    %v626 = vpop.permute.xlu0 %625
    %v628 = vmul.f32 %v623, %v626
    %629 = vset.pattern.permute.xlu0 4
    %630 = vperm.xlu0 %629, %v508
    %v631 = vpop.permute.xlu0 %630
    %v633 = vadd.f32 %v628, %v631
    %vm634 = vcmp.gt.f32.partialorder %v633, 0.0
    %v635 = vmul.f32 %v633, 0.3
    %v636 = vsel %vm634, %v633, %v635
    %638 = vrot.lane.b32.xlu0 %v636, 1
    %v639 = vpop.permute.xlu0 %638
    %v641 = vsel %vm120, 0.0, %v639
    %v642 = vmul.f32 %v641, %v547
    %643 = vrot.lane.b32.xlu0 %v636, 127
    %v644 = vpop.permute.xlu0 %643
    %v646 = vsel %vm552, %v644, 0.0
    %v647 = vmul.f32 %v646, %v557
    %v648 = vpack.c.bf16 %v636, %v642
    %v649 = vpack.c.bf16 %v647, %v647
    %650 = vset.pattern.permute.xlu0 5
    %651 = vperm.xlu0 %650, %v508
    %v652 = vpop.permute.xlu0 %651
    %v655 = vunpack.c.l.b16 %v509
    %v656 = vpack.c.b16 %v655, %v655
    %657 = vrot.lane.b32.xlu0 %v656, 104
    %v658 = vpop.permute.xlu0 %657
    %v660 = vsel %vm244, %v658, 0
    %v663 = vsel %vm139, %v649, 0
    %665 = vmatprep.subr.bf16.mxu0 0
    %666 = vmatpush1.bf16.msra.mxu0 %v648
    %667 = vmatprep.subr.bf16.mxu0 0
    %668 = vmatpush1.bf16.msra.mxu0 %v663
    %669 = vmatprep.subr.bf16.mxu0 0
    %670 = vmatpush1.bf16.msra.mxu0 0
    %671 = vmatprep.subr.bf16.mxu0 0
    %672 = vmatpush1.bf16.msra.mxu0 0
    %673 = vmatprep.subr.bf16.mxu0 0
    %674 = vmatpush1.bf16.msra.mxu0 0
    %675 = vmatprep.subr.bf16.mxu0 0
    %676 = vmatpush1.bf16.msra.mxu0 0
    %677 = vmatprep.subr.bf16.mxu0 0
    %678 = vmatpush1.bf16.msra.mxu0 0
    %679 = vmatprep.subr.bf16.mxu0 0
    %680 = vmatpush1.bf16.msra.mxu0 0
    %681 = vmatprep.subr.bf16.mxu0 0
    %682 = vmatpush1.bf16.msra.mxu0 0
    %683 = vmatprep.subr.bf16.mxu0 0
    %684 = vmatpush1.bf16.msra.mxu0 0
    %685 = vmatprep.subr.bf16.mxu0 0
    %686 = vmatpush1.bf16.msra.mxu0 0
    %687 = vmatprep.subr.bf16.mxu0 0
    %688 = vmatpush1.bf16.msra.mxu0 0
    %689 = vmatprep.subr.bf16.mxu0 0
    %690 = vmatpush1.bf16.msra.mxu0 0
    %691 = vmatprep.subr.bf16.mxu0 0
    %692 = vmatpush1.bf16.msra.mxu0 0
    %693 = vmatprep.subr.bf16.mxu0 0
    %694 = vmatpush1.bf16.msra.mxu0 0
    %695 = vmatprep.subr.bf16.mxu0 0
    %696 = vmatpush1.bf16.msra.mxu0 0
    %697 = vmatprep.mubr.bf16.mxu0 0
    %698 = vmatmul.mubr.bf16.gmra.mrb[0].mxu0 %v660
    %v699 = vpop.f32.mrb[0].mxu0
    %v700 = vadd.f32 %v652, %v699
    %v701 = vpop.f32.mrb[0].mxu0
    %v702 = vpop.f32.mrb[0].mxu0
    %v703 = vpop.f32.mrb[0].mxu0
    %704 = vdwg.mxu0
    %v705 = vadd.f32 %v700, %v507
    %v706 = vpack.c.bf16 %v705, %v705
    %v707 = vld [vmem:[%s8] sm:$0xf]
    %v708 = vld [vmem:[%s8 + $0x4] sm:$0x3]
    %v711 = vunpack.c.l.b16 %v707
    %v712 = vunpack.c.l.b16 %v708
    %v713 = vpack.c.b16 %v712, %v711
    %v715 = vsel %vm147, %v706, 0
    %v718 = vsel %vm151, %v713, 0
    %720 = vmatprep.subr.bf16.mxu0 0
    %721 = vmatpush1.bf16.msra.mxu0 %v718
    %722 = vmatprep.subr.bf16.mxu0 0
    %723 = vmatpush1.bf16.msra.mxu0 0
    %724 = vmatprep.subr.bf16.mxu0 0
    %725 = vmatpush1.bf16.msra.mxu0 0
    %726 = vmatprep.subr.bf16.mxu0 0
    %727 = vmatpush1.bf16.msra.mxu0 0
    %728 = vmatprep.subr.bf16.mxu0 0
    %729 = vmatpush1.bf16.msra.mxu0 0
    %730 = vmatprep.subr.bf16.mxu0 0
    %731 = vmatpush1.bf16.msra.mxu0 0
    %732 = vmatprep.subr.bf16.mxu0 0
    %733 = vmatpush1.bf16.msra.mxu0 0
    %734 = vmatprep.subr.bf16.mxu0 0
    %735 = vmatpush1.bf16.msra.mxu0 0
    %736 = vmatprep.subr.bf16.mxu0 0
    %737 = vmatpush1.bf16.msra.mxu0 0
    %738 = vmatprep.subr.bf16.mxu0 0
    %739 = vmatpush1.bf16.msra.mxu0 0
    %740 = vmatprep.subr.bf16.mxu0 0
    %741 = vmatpush1.bf16.msra.mxu0 0
    %742 = vmatprep.subr.bf16.mxu0 0
    %743 = vmatpush1.bf16.msra.mxu0 0
    %744 = vmatprep.subr.bf16.mxu0 0
    %745 = vmatpush1.bf16.msra.mxu0 0
    %746 = vmatprep.subr.bf16.mxu0 0
    %747 = vmatpush1.bf16.msra.mxu0 0
    %748 = vmatprep.subr.bf16.mxu0 0
    %749 = vmatpush1.bf16.msra.mxu0 0
    %750 = vmatprep.subr.bf16.mxu0 0
    %751 = vmatpush1.bf16.msra.mxu0 0
    %752 = vmatprep.mubr.bf16.mxu0 0
    %753 = vmatmul.mubr.bf16.gmra.mrb[0].mxu0 %v715
    %v754 = vpop.f32.mrb[0].mxu0
    %v755 = vadd.f32 0.0, %v754
    %v756 = vpop.f32.mrb[0].mxu0
    %v757 = vpop.f32.mrb[0].mxu0
    %v758 = vpop.f32.mrb[0].mxu0
    %759 = vdwg.mxu0
    %761 = vrot.lane.b32.xlu0 %v755, 124
    %v762 = vpop.permute.xlu0 %761
    %v764 = vmax.f32 %v755, %v762
    %765 = vrot.lane.b32.xlu0 %v755, 120
    %v766 = vpop.permute.xlu0 %765
    %v768 = vmax.f32 %v764, %v766
    %vm769 = vcmask 15360
    %v770 = vsel %vm769, %v768, 0.0
    %771 = vadd.xlane.f32.xlu0 %v770
    %v772 = vpop.xlane.xlu0 %771
    %774 = vrot.lane.b32.xlu0 %v768, 126
    %v775 = vpop.permute.xlu0 %774
    %v777 = vsel %vm769, %v775, 0.0
    %778 = vadd.xlane.f32.xlu0 %v777
    %v779 = vpop.xlane.xlu0 %778
    %v780 = vsel %vm120, %v772, %v779
    %v781 = vmul.f32 %v780, 0.5
    %v782 = vpack.c.bf16 %v781, %v781
    %783 = vset.pattern.permute.xlu0 7
    %784 = vperm.xlu0 %783, %v508
    %v785 = vpop.permute.xlu0 %784
    %787 = vrot.lane.b32.xlu0 %v656, 80
    %v788 = vpop.permute.xlu0 %787
    %v790 = vsel %vm443, %v788, 0
    %v793 = vsel %vm139, %v782, 0
    %795 = vmatprep.subr.bf16.mxu0 0
    %796 = vmatpush1.bf16.msra.mxu0 %v793
    %797 = vmatprep.subr.bf16.mxu0 0
    %798 = vmatpush1.bf16.msra.mxu0 0
    %799 = vmatprep.subr.bf16.mxu0 0
    %800 = vmatpush1.bf16.msra.mxu0 0
    %801 = vmatprep.subr.bf16.mxu0 0
    %802 = vmatpush1.bf16.msra.mxu0 0
    %803 = vmatprep.subr.bf16.mxu0 0
    %804 = vmatpush1.bf16.msra.mxu0 0
    %805 = vmatprep.subr.bf16.mxu0 0
    %806 = vmatpush1.bf16.msra.mxu0 0
    %807 = vmatprep.subr.bf16.mxu0 0
    %808 = vmatpush1.bf16.msra.mxu0 0
    %809 = vmatprep.subr.bf16.mxu0 0
    %810 = vmatpush1.bf16.msra.mxu0 0
    %811 = vmatprep.subr.bf16.mxu0 0
    %812 = vmatpush1.bf16.msra.mxu0 0
    %813 = vmatprep.subr.bf16.mxu0 0
    %814 = vmatpush1.bf16.msra.mxu0 0
    %815 = vmatprep.subr.bf16.mxu0 0
    %816 = vmatpush1.bf16.msra.mxu0 0
    %817 = vmatprep.subr.bf16.mxu0 0
    %818 = vmatpush1.bf16.msra.mxu0 0
    %819 = vmatprep.subr.bf16.mxu0 0
    %820 = vmatpush1.bf16.msra.mxu0 0
    %821 = vmatprep.subr.bf16.mxu0 0
    %822 = vmatpush1.bf16.msra.mxu0 0
    %823 = vmatprep.subr.bf16.mxu0 0
    %824 = vmatpush1.bf16.msra.mxu0 0
    %825 = vmatprep.subr.bf16.mxu0 0
    %826 = vmatpush1.bf16.msra.mxu0 0
    %827 = vmatprep.mubr.bf16.mxu0 0
    %828 = vmatmul.mubr.bf16.gmra.mrb[0].mxu0 %v790
    %v829 = vpop.f32.mrb[0].mxu0
    %v830 = vadd.f32 %v785, %v829
    %v831 = vpop.f32.mrb[0].mxu0
    %v832 = vpop.f32.mrb[0].mxu0
    %v833 = vpop.f32.mrb[0].mxu0
    %834 = vdwg.mxu0
    %v835 = vsub.f32 0.0, %v830
    %v836 = vmul.f32 %v835, 1.442695
    %v837 = vpow.pop %v836
    %v838 = vadd.f32 %v837, 1.0
    %v839 = vrcp.pop %v838
    %v840 = vmul.f32 1.0, %v839
    %842 = vset.pattern.permute.xlu0 0
    %843 = vperm.xlu0 %842, %v840
    %v844 = vpop.permute.xlu0 %843
    %846 = vset.pattern.permute.xlu0 1
    %847 = vperm.xlu0 %846, %v840
    %v848 = vpop.permute.xlu0 %847
    %v850 = vsel %vm769, %v844, %v848
    %v851 = vmul.f32 %v768, %v850
    %v852 = vadd.f32 %v851, %v850
    %853 = vst.msk [vmem:[%s9] sm:$0xff] %vm298, %v852
    // Predicated region
    $region54: #{tpu_custom_call.1} parent=1 // pred_check
      _
    $region55: #{tpu_custom_call.1} parent=1 // pred_check_branch
      %855 = sbr.rel (0) target = $region57
    $region56: #{tpu_custom_call.1} parent=1 // pred_region
      _
    $region57: #{tpu_custom_call.1} parent=1 // pred_fallthru
      _
    // Predicated region
    $region58: #{tpu_custom_call.1} parent=1 // pred_check
      _
    $region59: #{tpu_custom_call.1} parent=1 // pred_check_branch
      %857 = sbr.rel (0) target = $region61
    $region60: #{tpu_custom_call.1} parent=1 // pred_region
      _
    $region61: #{tpu_custom_call.1} parent=1 // pred_fallthru
      _
    %858 = vsyncpa [#allocation3], 1
    %859 = vsyncpa [#allocation5], 1
    %860 = vsyncpa [#allocation8], 1

</llo_original>
